<compile_context>
chip_gen: v6e
topology: v6e:2x2x1
jax: 0.10.0
libtpu: 0.0.40
codegen_flags: <defaults>
</compile_context>

<pallas_src>
import functools

import jax
import jax.numpy as jnp
from jax.experimental import pallas as pl
from jax.experimental.pallas import tpu as pltpu


# ---------------------------------------------------------------------------
# Kernel 1: fused prologue + recurrence (single grid step).
#   img_c     = relu(img @ W1_t + b1) @ Wih_img_t + (b_ih + b_hh)    (B, H)
#   emb_pre   = emb_flat @ Wih_emb_t          (T*B, H)  -- VMEM scratch only
#   h_t       = tanh(emb_pre_t + img_c + h_{t-1} @ Whh_t)            (B, H)
# Writes all hidden states as one dense (TB_out, H) f32 slab (time-major),
# with decode-padding rows zeroed.
# ---------------------------------------------------------------------------
def prologue_rnn_kernel(imgf_ref, w1_ref, b1_ref, wih_img_ref, brnn_ref,
                        emb_ref, wih_emb_ref, whh_ref, h_out_ref, emb_pre_ref,
                        *, T, B, TB_out):
    # fc1 + relu (image branch), fused with its half of the input projection.
    img = jnp.maximum(
        jnp.dot(imgf_ref[...], w1_ref[...], preferred_element_type=jnp.float32)
        + b1_ref[...], 0.0)                                        # (B, E) f32
    img_c = (jnp.dot(img.astype(wih_img_ref.dtype), wih_img_ref[...],
                     preferred_element_type=jnp.float32)
             + brnn_ref[...])                    # (B, H) f32, loop invariant
    # Caption-embedding half of the input projection: one batched matmul,
    # result stays in VMEM scratch (no HBM round trip).
    emb_pre_ref[...] = jnp.dot(emb_ref[...], wih_emb_ref[...],
                               preferred_element_type=jnp.float32)  # (TB, H)
    whh = whh_ref[...]                           # (H, H) bf16, hoisted

    # Zero the decode-padding rows so the output slab carries no garbage.
    if TB_out > T * B:
        h_out_ref[pl.ds(T * B, TB_out - T * B), :] = jnp.zeros(
            (TB_out - T * B, h_out_ref.shape[1]), h_out_ref.dtype)

    h = jnp.zeros(img_c.shape, jnp.float32)
    # TODO(synk): for large T switch to lax.fori_loop(..., unroll=True) and
    # hold Whh in MXU weight regs (pltpu.matmul_push_rhs) across steps.
    for t in range(T):                           # static unroll (T is small)
        pre = (emb_pre_ref[pl.ds(t * B, B), :] + img_c
               + jnp.dot(h.astype(whh.dtype), whh,
                         preferred_element_type=jnp.float32))
        h = jnp.tanh(pre)
        h_out_ref[pl.ds(t * B, B), :] = h        # aligned per-step store


def prologue_rnn(img_f, w1_t, b1, wih_img_t, b_rnn, emb_flat, wih_emb_t,
                 whh_t, *, T, B, TB_out):
    Bp, F_ = img_f.shape
    E = w1_t.shape[1]
    H = wih_img_t.shape[1]
    TB = emb_flat.shape[0]
    kern = functools.partial(prologue_rnn_kernel, T=T, B=B, TB_out=TB_out)
    return pl.pallas_call(
        kern,
        out_shape=jax.ShapeDtypeStruct((TB_out, H), jnp.float32),
        grid=(1,),
        in_specs=[
            pl.BlockSpec((Bp, F_), lambda i: (0, 0)),
            pl.BlockSpec((F_, E), lambda i: (0, 0)),
            pl.BlockSpec((1, E), lambda i: (0, 0)),
            pl.BlockSpec((E, H), lambda i: (0, 0)),
            pl.BlockSpec((1, H), lambda i: (0, 0)),
            pl.BlockSpec((TB, E), lambda i: (0, 0)),
            pl.BlockSpec((E, H), lambda i: (0, 0)),
            pl.BlockSpec((H, H), lambda i: (0, 0)),
        ],
        out_specs=pl.BlockSpec((TB_out, H), lambda i: (0, 0)),
        scratch_shapes=[pltpu.VMEM((TB, H), jnp.float32)],   # emb_pre, VMEM only
        compiler_params=pltpu.CompilerParams(
            dimension_semantics=("arbitrary",),     # serial recurrence
            vmem_limit_bytes=48 * 1024 * 1024),
    )(img_f, w1_t, b1, wih_img_t, b_rnn, emb_flat, wih_emb_t, whh_t)


# ---------------------------------------------------------------------------
# Kernel 2: batched decoder:  relu(H_all @ W2_t + b2) @ Wo_tile + bo_tile
# Grid = (row tiles [parallel], vocab tiles [arbitrary, inner]).
# fc2 output is cached per row tile in bf16 VMEM scratch and reused across
# all vocab tiles.
# ---------------------------------------------------------------------------
def decode_proj_kernel(h_ref, w2_ref, b2_ref, wo_ref, bo_ref, out_ref, dec_ref):
    @pl.when(pl.program_id(1) == 0)        # new row tile -> recompute fc2 once
    def _():
        dec = jnp.maximum(
            jnp.dot(h_ref[...].astype(w2_ref.dtype), w2_ref[...],
                    preferred_element_type=jnp.float32)
            + b2_ref[...], 0.0)
        dec_ref[...] = dec.astype(dec_ref.dtype)          # cache as bf16

    out_ref[...] = (
        jnp.dot(dec_ref[...], wo_ref[...],
                preferred_element_type=jnp.float32)
        + bo_ref[...]).astype(out_ref.dtype)


def decode_proj(h_all, w2_t, b2, wo_t, bo):
    TBp, H = h_all.shape
    E = w2_t.shape[1]
    V = wo_t.shape[1]
    # Row tile: >= 128 (wrapper pads rows to a multiple of 128).
    rt = 256 if TBp % 256 == 0 else 128
    if TBp % rt != 0:
        rt = TBp                                   # defensive fallback
    # Vocab tile: lane-dense, capped at 1024 (fits v7x's 64 MiB VMEM).
    tv = V
    for cand in (1024, 512, 256, 128):
        if V % cand == 0:
            tv = cand
            break
    # TODO(synk): consider pipeline_mode=pl.Buffered(1) on the constant-index
    # w2_t/b2 specs to return VMEM for larger vocab tiles on v5e.
    return pl.pallas_call(
        decode_proj_kernel,
        out_shape=jax.ShapeDtypeStruct((TBp, V), jnp.float32),
        grid=(TBp // rt, V // tv),
        in_specs=[
            pl.BlockSpec((rt, H), lambda r, j: (r, 0)),
            pl.BlockSpec((H, E), lambda r, j: (0, 0)),
            pl.BlockSpec((1, E), lambda r, j: (0, 0)),
            pl.BlockSpec((E, tv), lambda r, j: (0, j)),
            pl.BlockSpec((1, tv), lambda r, j: (0, j)),
        ],
        out_specs=pl.BlockSpec((rt, tv), lambda r, j: (r, j)),
        scratch_shapes=[pltpu.VMEM((rt, E), jnp.bfloat16)],   # fc2 cache
        compiler_params=pltpu.CompilerParams(
            dimension_semantics=("parallel", "arbitrary"),
            vmem_limit_bytes=48 * 1024 * 1024),
    )(h_all, w2_t, b2, wo_t, bo)


# ---------------------------------------------------------------------------
# Full model forward (glue in plain JAX; hot paths in Pallas).
# ---------------------------------------------------------------------------
def captioning_forward(params, img_features, captions):
    B, F_ = img_features.shape
    T = captions.shape[1]
    E = params["w1_t"].shape[1]
    V = params["wo_t"].shape[1]
    bf = jnp.bfloat16

    # Pad batch to a sublane-aligned 8 rows; pad decode rows to >= 128.
    B_pad = max(8, ((B + 7) // 8) * 8)
    TB = T * B_pad
    TB_dec = ((TB + 127) // 128) * 128

    # bf16 weights for the MXU; biases stay f32 (added after f32 accumulation).
    w1_bf = params["w1_t"].astype(bf)
    wih_img_bf = params["wih_img_t"].astype(bf)
    wih_emb_bf = params["wih_emb_t"].astype(bf)
    whh_bf = params["whh_t"].astype(bf)
    w2_bf = params["w2_t"].astype(bf)
    wo_bf = params["wo_t"].astype(bf)

    img_f = jnp.zeros((B_pad, F_), jnp.float32).at[:B, :].set(img_features)
    cap_pad = jnp.zeros((B_pad, T), captions.dtype).at[:B, :].set(captions)

    # Embedding gather (padding_idx=0 row is zero) — plain JAX glue.
    emb = jnp.take(params["embedding"], cap_pad, axis=0)       # (B_pad, T, E)
    # Time-major flat rows: row index = t*B_pad + b.
    emb_flat = jnp.transpose(emb, (1, 0, 2)).reshape(TB, E).astype(bf)

    h_all = prologue_rnn(
        img_f.astype(bf), w1_bf, params["b1"], wih_img_bf, params["b_rnn"],
        emb_flat, wih_emb_bf, whh_bf, T=T, B=B_pad, TB_out=TB_dec)  # (TB_dec,H)

    logits = decode_proj(h_all, w2_bf, params["b2"], wo_bf, params["bo"])
    # Strip padding rows, back to (B, T, V).
    # TODO(synk): at production V, keep a time-major output contract (or emit
    # bf16) to avoid this full-logits transpose.
    logits = logits[:TB].reshape(T, B_pad, V)[:, :B, :]
    return jnp.transpose(logits, (1, 0, 2))


# Pure-JAX f32 reference for verification.
def captioning_reference(params, img_features, captions):
    B = img_features.shape[0]
    T = captions.shape[1]
    img = jnp.maximum(img_features @ params["w1_t"] + params["b1"], 0.0)
    emb = jnp.take(params["embedding"], captions, axis=0)
    wih_t = jnp.concatenate([params["wih_img_t"], params["wih_emb_t"]], axis=0)
    h = jnp.zeros((B, params["whh_t"].shape[0]), jnp.float32)
    outs = []
    for t in range(T):
        x_t = jnp.concatenate([img, emb[:, t, :]], axis=-1)
        h = jnp.tanh(x_t @ wih_t + h @ params["whh_t"] + params["b_rnn"])
        dec = jnp.maximum(h @ params["w2_t"] + params["b2"], 0.0)
        outs.append(dec @ params["wo_t"] + params["bo"])
    return jnp.stack(outs, axis=1)


def init_params(key, vocab_size, feature_dim, embedding_dim, hidden_dim):
    ks = jax.random.split(key, 11)
    s = 0.02
    E = embedding_dim
    w1 = jax.random.normal(ks[0], (E, feature_dim), jnp.float32) * s
    b1 = jax.random.normal(ks[1], (1, E), jnp.float32) * s
    embedding = jax.random.normal(ks[2], (vocab_size, E), jnp.float32) * s
    embedding = embedding.at[0].set(0.0)   # padding_idx=0
    w_ih = jax.random.normal(ks[3], (hidden_dim, 2 * E), jnp.float32) * s
    w_hh = jax.random.normal(ks[4], (hidden_dim, hidden_dim), jnp.float32) * s
    b_ih = jax.random.normal(ks[5], (hidden_dim,), jnp.float32) * s
    b_hh = jax.random.normal(ks[6], (hidden_dim,), jnp.float32) * s
    w2 = jax.random.normal(ks[7], (E, hidden_dim), jnp.float32) * s
    b2 = jax.random.normal(ks[8], (1, E), jnp.float32) * s
    wo = jax.random.normal(ks[9], (vocab_size, E), jnp.float32) * s
    bo = jax.random.normal(ks[10], (1, vocab_size), jnp.float32) * s
    return {
        "w1_t": w1.T, "b1": b1,
        "embedding": embedding,
        "wih_img_t": w_ih[:, :E].T,     # (E, H) image half of W_ih
        "wih_emb_t": w_ih[:, E:].T,     # (E, H) caption-embedding half of W_ih
        "whh_t": w_hh.T,
        "b_rnn": (b_ih + b_hh)[None, :],
        "w2_t": w2.T, "b2": b2,
        "wo_t": wo.T, "bo": bo,
    }


if __name__ == "__main__":
    # Small-but-tile-friendly shapes consistent with the module's forward.
    B, T = 2, 8
    feature_dim, embedding_dim, hidden_dim, vocab = 512, 128, 128, 256

    key = jax.random.PRNGKey(0)
    k_p, k_img, k_cap = jax.random.split(key, 3)
    params = init_params(k_p, vocab, feature_dim, embedding_dim, hidden_dim)

    img_features = jax.random.normal(k_img, (B, feature_dim), jnp.float32)
    captions = jax.random.randint(k_cap, (B, T), 0, vocab, dtype=jnp.int32)

    fwd = jax.jit(captioning_forward)
    out = jax.block_until_ready(fwd(params, img_features, captions))

    ref = captioning_reference(params, img_features, captions)
    assert out.shape == (B, T, vocab), out.shape
    assert bool(jnp.all(jnp.isfinite(out)))
    max_err = float(jnp.max(jnp.abs(out - ref)))
    assert bool(jnp.allclose(out, ref, rtol=2e-2, atol=5e-3)), max_err

    print("KERNEL_OK")
</pallas_src>

<mosaic_0001>
module attributes {stable_mosaic.version = 11 : i64} {
  func.func @decode_proj_kernel(%arg0: i32, %arg1: i32, %arg2: memref<128x128xf32, #tpu.memory_space<vmem>>, %arg3: memref<128x128xbf16, #tpu.memory_space<vmem>>, %arg4: memref<1x128xf32, #tpu.memory_space<vmem>>, %arg5: memref<128x256xbf16, #tpu.memory_space<vmem>>, %arg6: memref<1x256xf32, #tpu.memory_space<vmem>>, %arg7: memref<128x256xf32, #tpu.memory_space<vmem>>, %arg8: memref<128x128xbf16, #tpu.memory_space<vmem>>) attributes {dimension_semantics = [#tpu.dimension_semantics<parallel>, #tpu.dimension_semantics<arbitrary>], iteration_bounds = array<i64: 1, 1>, scalar_prefetch = 0 : i64, scratch_operands = 1 : i64, tpu.core_type = #tpu.core_type<tc>, window_params = [{transform_indices = @transform_0, window_bounds = array<i64: 128, 128>}, {pipeline_mode = #tpu.pipeline_mode<synchronous>, transform_indices = @transform_1, window_bounds = array<i64: 128, 128>}, {pipeline_mode = #tpu.pipeline_mode<synchronous>, transform_indices = @transform_2, window_bounds = array<i64: 1, 128>}, {transform_indices = @transform_3, window_bounds = array<i64: 128, 256>}, {transform_indices = @transform_4, window_bounds = array<i64: 1, 256>}, {transform_indices = @transform_5, window_bounds = array<i64: 128, 256>}]} {
    %c0_i32 = arith.constant 0 : i32
    %0 = arith.cmpi eq, %arg1, %c0_i32 : i32
    %1 = arith.extui %0 : i1 to i32
    %c0_i32_0 = arith.constant 0 : i32
    %2 = arith.cmpi ne, %1, %c0_i32_0 : i32
    scf.if %2 {
      %c0_8 = arith.constant 0 : index
      %c0_9 = arith.constant 0 : index
      %10 = vector.load %arg2[%c0_8, %c0_9] : memref<128x128xf32, #tpu.memory_space<vmem>>, vector<128x128xf32>
      %11 = arith.truncf %10 : vector<128x128xf32> to vector<128x128xbf16>
      %c0_10 = arith.constant 0 : index
      %c0_11 = arith.constant 0 : index
      %12 = vector.load %arg3[%c0_10, %c0_11] : memref<128x128xbf16, #tpu.memory_space<vmem>>, vector<128x128xbf16>
      %cst_12 = arith.constant dense<0.000000e+00> : vector<128x128xf32>
      %13 = tpu.matmul %11, %12, %cst_12 {dimension_numbers = #tpu.dot_dimension_numbers<[1], [0], [0], [1], [0, 0, 1, 1], [], []>} : vector<128x128xbf16>, vector<128x128xbf16>, vector<128x128xf32> -> vector<128x128xf32>
      %c0_13 = arith.constant 0 : index
      %c0_14 = arith.constant 0 : index
      %14 = vector.load %arg4[%c0_13, %c0_14] : memref<1x128xf32, #tpu.memory_space<vmem>>, vector<1x128xf32>
      %15 = vector.broadcast %14 : vector<1x128xf32> to vector<128x128xf32>
      %16 = arith.addf %13, %15 : vector<128x128xf32>
      %cst_15 = arith.constant 0.000000e+00 : f32
      %17 = vector.broadcast %cst_15 : f32 to vector<128x128xf32>
      %18 = arith.maximumf %16, %17 : vector<128x128xf32>
      %19 = arith.truncf %18 : vector<128x128xf32> to vector<128x128xbf16>
      %c0_16 = arith.constant 0 : index
      %c0_17 = arith.constant 0 : index
      %20 = vector.load %arg8[%c0_16, %c0_17] : memref<128x128xbf16, #tpu.memory_space<vmem>>, vector<128x128xbf16>
      tpu.vector_store %arg8[%c0_16, %c0_17], %19 {strides = array<i32>} : memref<128x128xbf16, #tpu.memory_space<vmem>>, vector<128x128xbf16>,
    } else {
    }
    %c0 = arith.constant 0 : index
    %c0_1 = arith.constant 0 : index
    %3 = vector.load %arg8[%c0, %c0_1] : memref<128x128xbf16, #tpu.memory_space<vmem>>, vector<128x128xbf16>
    %c0_2 = arith.constant 0 : index
    %c0_3 = arith.constant 0 : index
    %4 = vector.load %arg5[%c0_2, %c0_3] : memref<128x256xbf16, #tpu.memory_space<vmem>>, vector<128x256xbf16>
    %cst = arith.constant dense<0.000000e+00> : vector<128x256xf32>
    %5 = tpu.matmul %3, %4, %cst {dimension_numbers = #tpu.dot_dimension_numbers<[1], [0], [0], [1], [0, 0, 1, 1], [], []>} : vector<128x128xbf16>, vector<128x256xbf16>, vector<128x256xf32> -> vector<128x256xf32>
    %c0_4 = arith.constant 0 : index
    %c0_5 = arith.constant 0 : index
    %6 = vector.load %arg6[%c0_4, %c0_5] : memref<1x256xf32, #tpu.memory_space<vmem>>, vector<1x256xf32>
    %7 = vector.broadcast %6 : vector<1x256xf32> to vector<128x256xf32>
    %8 = arith.addf %5, %7 : vector<128x256xf32>
    %c0_6 = arith.constant 0 : index
    %c0_7 = arith.constant 0 : index
    %9 = vector.load %arg7[%c0_6, %c0_7] : memref<128x256xf32, #tpu.memory_space<vmem>>, vector<128x256xf32>
    tpu.vector_store %arg7[%c0_6, %c0_7], %8 {strides = array<i32>} : memref<128x256xf32, #tpu.memory_space<vmem>>, vector<128x256xf32>,
    return
  }
  func.func @transform_0(%arg0: i32, %arg1: i32) -> (i32, i32) {
    %c0_i32 = arith.constant 0 : i32
    %c0_i32_0 = arith.constant 0 : i32
    return %arg0, %c0_i32 : i32, i32
  }
  func.func @transform_1(%arg0: i32, %arg1: i32) -> (i32, i32) {
    %c0_i32 = arith.constant 0 : i32
    %c0_i32_0 = arith.constant 0 : i32
    %c0_i32_1 = arith.constant 0 : i32
    return %c0_i32, %c0_i32_0 : i32, i32
  }
  func.func @transform_2(%arg0: i32, %arg1: i32) -> (i32, i32) {
    %c0_i32 = arith.constant 0 : i32
    %c0_i32_0 = arith.constant 0 : i32
    %c0_i32_1 = arith.constant 0 : i32
    return %c0_i32, %c0_i32_0 : i32, i32
  }
  func.func @transform_3(%arg0: i32, %arg1: i32) -> (i32, i32) {
    %c0_i32 = arith.constant 0 : i32
    %c0_i32_0 = arith.constant 0 : i32
    return %c0_i32, %arg1 : i32, i32
  }
  func.func @transform_4(%arg0: i32, %arg1: i32) -> (i32, i32) {
    %c0_i32 = arith.constant 0 : i32
    %c0_i32_0 = arith.constant 0 : i32
    return %c0_i32, %arg1 : i32, i32
  }
  func.func @transform_5(%arg0: i32, %arg1: i32) -> (i32, i32) {
    %c0_i32 = arith.constant 0 : i32
    return %arg0, %arg1 : i32, i32
  }
}

module attributes {stable_mosaic.version = 11 : i64} {
  func.func @prologue_rnn_kernel(%arg0: i32, %arg1: memref<8x512xbf16, #tpu.memory_space<vmem>>, %arg2: memref<512x128xbf16, #tpu.memory_space<vmem>>, %arg3: memref<1x128xf32, #tpu.memory_space<vmem>>, %arg4: memref<128x128xbf16, #tpu.memory_space<vmem>>, %arg5: memref<1x128xf32, #tpu.memory_space<vmem>>, %arg6: memref<64x128xbf16, #tpu.memory_space<vmem>>, %arg7: memref<128x128xbf16, #tpu.memory_space<vmem>>, %arg8: memref<128x128xbf16, #tpu.memory_space<vmem>>, %arg9: memref<128x128xf32, #tpu.memory_space<vmem>>, %arg10: memref<64x128xf32, #tpu.memory_space<vmem>>) attributes {dimension_semantics = [#tpu.dimension_semantics<arbitrary>], iteration_bounds = array<i64: 1>, scalar_prefetch = 0 : i64, scratch_operands = 1 : i64, tpu.core_type = #tpu.core_type<tc>, window_params = [{pipeline_mode = #tpu.pipeline_mode<synchronous>, transform_indices = @transform_0, window_bounds = array<i64: 8, 512>}, {pipeline_mode = #tpu.pipeline_mode<synchronous>, transform_indices = @transform_1, window_bounds = array<i64: 512, 128>}, {pipeline_mode = #tpu.pipeline_mode<synchronous>, transform_indices = @transform_2, window_bounds = array<i64: 1, 128>}, {pipeline_mode = #tpu.pipeline_mode<synchronous>, transform_indices = @transform_3, window_bounds = array<i64: 128, 128>}, {pipeline_mode = #tpu.pipeline_mode<synchronous>, transform_indices = @transform_4, window_bounds = array<i64: 1, 128>}, {pipeline_mode = #tpu.pipeline_mode<synchronous>, transform_indices = @transform_5, window_bounds = array<i64: 64, 128>}, {pipeline_mode = #tpu.pipeline_mode<synchronous>, transform_indices = @transform_6, window_bounds = array<i64: 128, 128>}, {pipeline_mode = #tpu.pipeline_mode<synchronous>, transform_indices = @transform_7, window_bounds = array<i64: 128, 128>}, {pipeline_mode = #tpu.pipeline_mode<synchronous>, transform_indices = @transform_8, window_bounds = array<i64: 128, 128>}]} {
    %c0 = arith.constant 0 : index
    %c0_0 = arith.constant 0 : index
    %0 = vector.load %arg1[%c0, %c0_0] : memref<8x512xbf16, #tpu.memory_space<vmem>>, vector<8x512xbf16>
    %c0_1 = arith.constant 0 : index
    %c0_2 = arith.constant 0 : index
    %1 = vector.load %arg2[%c0_1, %c0_2] : memref<512x128xbf16, #tpu.memory_space<vmem>>, vector<512x128xbf16>
    %cst = arith.constant dense<0.000000e+00> : vector<8x128xf32>
    %2 = tpu.matmul %0, %1, %cst {dimension_numbers = #tpu.dot_dimension_numbers<[1], [0], [0], [1], [0, 0, 1, 1], [], []>} : vector<8x512xbf16>, vector<512x128xbf16>, vector<8x128xf32> -> vector<8x128xf32>
    %c0_3 = arith.constant 0 : index
    %c0_4 = arith.constant 0 : index
    %3 = vector.load %arg3[%c0_3, %c0_4] : memref<1x128xf32, #tpu.memory_space<vmem>>, vector<1x128xf32>
    %4 = vector.broadcast %3 : vector<1x128xf32> to vector<8x128xf32>
    %5 = arith.addf %2, %4 : vector<8x128xf32>
    %cst_5 = arith.constant 0.000000e+00 : f32
    %6 = vector.broadcast %cst_5 : f32 to vector<8x128xf32>
    %7 = arith.maximumf %5, %6 : vector<8x128xf32>
    %8 = arith.truncf %7 : vector<8x128xf32> to vector<8x128xbf16>
    %c0_6 = arith.constant 0 : index
    %c0_7 = arith.constant 0 : index
    %9 = vector.load %arg4[%c0_6, %c0_7] : memref<128x128xbf16, #tpu.memory_space<vmem>>, vector<128x128xbf16>
    %cst_8 = arith.constant dense<0.000000e+00> : vector<8x128xf32>
    %10 = tpu.matmul %8, %9, %cst_8 {dimension_numbers = #tpu.dot_dimension_numbers<[1], [0], [0], [1], [0, 0, 1, 1], [], []>} : vector<8x128xbf16>, vector<128x128xbf16>, vector<8x128xf32> -> vector<8x128xf32>
    %c0_9 = arith.constant 0 : index
    %c0_10 = arith.constant 0 : index
    %11 = vector.load %arg5[%c0_9, %c0_10] : memref<1x128xf32, #tpu.memory_space<vmem>>, vector<1x128xf32>
    %12 = vector.broadcast %11 : vector<1x128xf32> to vector<8x128xf32>
    %13 = arith.addf %10, %12 : vector<8x128xf32>
    %c0_11 = arith.constant 0 : index
    %c0_12 = arith.constant 0 : index
    %14 = vector.load %arg6[%c0_11, %c0_12] : memref<64x128xbf16, #tpu.memory_space<vmem>>, vector<64x128xbf16>
    %c0_13 = arith.constant 0 : index
    %c0_14 = arith.constant 0 : index
    %15 = vector.load %arg7[%c0_13, %c0_14] : memref<128x128xbf16, #tpu.memory_space<vmem>>, vector<128x128xbf16>
    %cst_15 = arith.constant dense<0.000000e+00> : vector<64x128xf32>
    %16 = tpu.matmul %14, %15, %cst_15 {dimension_numbers = #tpu.dot_dimension_numbers<[1], [0], [0], [1], [0, 0, 1, 1], [], []>} : vector<64x128xbf16>, vector<128x128xbf16>, vector<64x128xf32> -> vector<64x128xf32>
    %c0_16 = arith.constant 0 : index
    %c0_17 = arith.constant 0 : index
    %17 = vector.load %arg10[%c0_16, %c0_17] : memref<64x128xf32, #tpu.memory_space<vmem>>, vector<64x128xf32>
    tpu.vector_store %arg10[%c0_16, %c0_17], %16 {strides = array<i32>} : memref<64x128xf32, #tpu.memory_space<vmem>>, vector<64x128xf32>,
    %c0_18 = arith.constant 0 : index
    %c0_19 = arith.constant 0 : index
    %18 = vector.load %arg8[%c0_18, %c0_19] : memref<128x128xbf16, #tpu.memory_space<vmem>>, vector<128x128xbf16>
    %cst_20 = arith.constant 0.000000e+00 : f32
    %19 = vector.broadcast %cst_20 : f32 to vector<64x128xf32>
    %c64 = arith.constant 64 : index
    %c0_21 = arith.constant 0 : index
    %20 = vector.load %arg9[%c64, %c0_21] : memref<128x128xf32, #tpu.memory_space<vmem>>, vector<64x128xf32>
    tpu.vector_store %arg9[%c64, %c0_21], %19 {strides = array<i32>} : memref<128x128xf32, #tpu.memory_space<vmem>>, vector<64x128xf32>,
    %cst_22 = arith.constant 0.000000e+00 : f32
    %21 = vector.broadcast %cst_22 : f32 to vector<8x128xf32>
    %c0_23 = arith.constant 0 : index
    %c0_24 = arith.constant 0 : index
    %22 = vector.load %arg10[%c0_23, %c0_24] : memref<64x128xf32, #tpu.memory_space<vmem>>, vector<8x128xf32>
    %23 = arith.addf %22, %13 : vector<8x128xf32>
    %24 = arith.truncf %21 : vector<8x128xf32> to vector<8x128xbf16>
    %cst_25 = arith.constant dense<0.000000e+00> : vector<8x128xf32>
    %25 = tpu.matmul %24, %18, %cst_25 {dimension_numbers = #tpu.dot_dimension_numbers<[1], [0], [0], [1], [0, 0, 1, 1], [], []>} : vector<8x128xbf16>, vector<128x128xbf16>, vector<8x128xf32> -> vector<8x128xf32>
    %26 = arith.addf %23, %25 : vector<8x128xf32>
    %27 = math.tanh %26 : vector<8x128xf32>
    %c0_26 = arith.constant 0 : index
    %c0_27 = arith.constant 0 : index
    %28 = vector.load %arg9[%c0_26, %c0_27] : memref<128x128xf32, #tpu.memory_space<vmem>>, vector<8x128xf32>
    tpu.vector_store %arg9[%c0_26, %c0_27], %27 {strides = array<i32>} : memref<128x128xf32, #tpu.memory_space<vmem>>, vector<8x128xf32>,
    %c8 = arith.constant 8 : index
    %c0_28 = arith.constant 0 : index
    %29 = vector.load %arg10[%c8, %c0_28] : memref<64x128xf32, #tpu.memory_space<vmem>>, vector<8x128xf32>
    %30 = arith.addf %29, %13 : vector<8x128xf32>
    %31 = arith.truncf %27 : vector<8x128xf32> to vector<8x128xbf16>
    %cst_29 = arith.constant dense<0.000000e+00> : vector<8x128xf32>
    %32 = tpu.matmul %31, %18, %cst_29 {dimension_numbers = #tpu.dot_dimension_numbers<[1], [0], [0], [1], [0, 0, 1, 1], [], []>} : vector<8x128xbf16>, vector<128x128xbf16>, vector<8x128xf32> -> vector<8x128xf32>
    %33 = arith.addf %30, %32 : vector<8x128xf32>
    %34 = math.tanh %33 : vector<8x128xf32>
    %c8_30 = arith.constant 8 : index
    %c0_31 = arith.constant 0 : index
    %35 = vector.load %arg9[%c8_30, %c0_31] : memref<128x128xf32, #tpu.memory_space<vmem>>, vector<8x128xf32>
    tpu.vector_store %arg9[%c8_30, %c0_31], %34 {strides = array<i32>} : memref<128x128xf32, #tpu.memory_space<vmem>>, vector<8x128xf32>,
    %c16 = arith.constant 16 : index
    %c0_32 = arith.constant 0 : index
    %36 = vector.load %arg10[%c16, %c0_32] : memref<64x128xf32, #tpu.memory_space<vmem>>, vector<8x128xf32>
    %37 = arith.addf %36, %13 : vector<8x128xf32>
    %38 = arith.truncf %34 : vector<8x128xf32> to vector<8x128xbf16>
    %cst_33 = arith.constant dense<0.000000e+00> : vector<8x128xf32>
    %39 = tpu.matmul %38, %18, %cst_33 {dimension_numbers = #tpu.dot_dimension_numbers<[1], [0], [0], [1], [0, 0, 1, 1], [], []>} : vector<8x128xbf16>, vector<128x128xbf16>, vector<8x128xf32> -> vector<8x128xf32>
    %40 = arith.addf %37, %39 : vector<8x128xf32>
    %41 = math.tanh %40 : vector<8x128xf32>
    %c16_34 = arith.constant 16 : index
    %c0_35 = arith.constant 0 : index
    %42 = vector.load %arg9[%c16_34, %c0_35] : memref<128x128xf32, #tpu.memory_space<vmem>>, vector<8x128xf32>
    tpu.vector_store %arg9[%c16_34, %c0_35], %41 {strides = array<i32>} : memref<128x128xf32, #tpu.memory_space<vmem>>, vector<8x128xf32>,
    %c24 = arith.constant 24 : index
    %c0_36 = arith.constant 0 : index
    %43 = vector.load %arg10[%c24, %c0_36] : memref<64x128xf32, #tpu.memory_space<vmem>>, vector<8x128xf32>
    %44 = arith.addf %43, %13 : vector<8x128xf32>
    %45 = arith.truncf %41 : vector<8x128xf32> to vector<8x128xbf16>
    %cst_37 = arith.constant dense<0.000000e+00> : vector<8x128xf32>
    %46 = tpu.matmul %45, %18, %cst_37 {dimension_numbers = #tpu.dot_dimension_numbers<[1], [0], [0], [1], [0, 0, 1, 1], [], []>} : vector<8x128xbf16>, vector<128x128xbf16>, vector<8x128xf32> -> vector<8x128xf32>
    %47 = arith.addf %44, %46 : vector<8x128xf32>
    %48 = math.tanh %47 : vector<8x128xf32>
    %c24_38 = arith.constant 24 : index
    %c0_39 = arith.constant 0 : index
    %49 = vector.load %arg9[%c24_38, %c0_39] : memref<128x128xf32, #tpu.memory_space<vmem>>, vector<8x128xf32>
    tpu.vector_store %arg9[%c24_38, %c0_39], %48 {strides = array<i32>} : memref<128x128xf32, #tpu.memory_space<vmem>>, vector<8x128xf32>,
    %c32 = arith.constant 32 : index
    %c0_40 = arith.constant 0 : index
    %50 = vector.load %arg10[%c32, %c0_40] : memref<64x128xf32, #tpu.memory_space<vmem>>, vector<8x128xf32>
    %51 = arith.addf %50, %13 : vector<8x128xf32>
    %52 = arith.truncf %48 : vector<8x128xf32> to vector<8x128xbf16>
    %cst_41 = arith.constant dense<0.000000e+00> : vector<8x128xf32>
    %53 = tpu.matmul %52, %18, %cst_41 {dimension_numbers = #tpu.dot_dimension_numbers<[1], [0], [0], [1], [0, 0, 1, 1], [], []>} : vector<8x128xbf16>, vector<128x128xbf16>, vector<8x128xf32> -> vector<8x128xf32>
    %54 = arith.addf %51, %53 : vector<8x128xf32>
    %55 = math.tanh %54 : vector<8x128xf32>
    %c32_42 = arith.constant 32 : index
    %c0_43 = arith.constant 0 : index
    %56 = vector.load %arg9[%c32_42, %c0_43] : memref<128x128xf32, #tpu.memory_space<vmem>>, vector<8x128xf32>
    tpu.vector_store %arg9[%c32_42, %c0_43], %55 {strides = array<i32>} : memref<128x128xf32, #tpu.memory_space<vmem>>, vector<8x128xf32>,
    %c40 = arith.constant 40 : index
    %c0_44 = arith.constant 0 : index
    %57 = vector.load %arg10[%c40, %c0_44] : memref<64x128xf32, #tpu.memory_space<vmem>>, vector<8x128xf32>
    %58 = arith.addf %57, %13 : vector<8x128xf32>
    %59 = arith.truncf %55 : vector<8x128xf32> to vector<8x128xbf16>
    %cst_45 = arith.constant dense<0.000000e+00> : vector<8x128xf32>
    %60 = tpu.matmul %59, %18, %cst_45 {dimension_numbers = #tpu.dot_dimension_numbers<[1], [0], [0], [1], [0, 0, 1, 1], [], []>} : vector<8x128xbf16>, vector<128x128xbf16>, vector<8x128xf32> -> vector<8x128xf32>
    %61 = arith.addf %58, %60 : vector<8x128xf32>
    %62 = math.tanh %61 : vector<8x128xf32>
    %c40_46 = arith.constant 40 : index
    %c0_47 = arith.constant 0 : index
    %63 = vector.load %arg9[%c40_46, %c0_47] : memref<128x128xf32, #tpu.memory_space<vmem>>, vector<8x128xf32>
    tpu.vector_store %arg9[%c40_46, %c0_47], %62 {strides = array<i32>} : memref<128x128xf32, #tpu.memory_space<vmem>>, vector<8x128xf32>,
    %c48 = arith.constant 48 : index
    %c0_48 = arith.constant 0 : index
    %64 = vector.load %arg10[%c48, %c0_48] : memref<64x128xf32, #tpu.memory_space<vmem>>, vector<8x128xf32>
    %65 = arith.addf %64, %13 : vector<8x128xf32>
    %66 = arith.truncf %62 : vector<8x128xf32> to vector<8x128xbf16>
    %cst_49 = arith.constant dense<0.000000e+00> : vector<8x128xf32>
    %67 = tpu.matmul %66, %18, %cst_49 {dimension_numbers = #tpu.dot_dimension_numbers<[1], [0], [0], [1], [0, 0, 1, 1], [], []>} : vector<8x128xbf16>, vector<128x128xbf16>, vector<8x128xf32> -> vector<8x128xf32>
    %68 = arith.addf %65, %67 : vector<8x128xf32>
    %69 = math.tanh %68 : vector<8x128xf32>
    %c48_50 = arith.constant 48 : index
    %c0_51 = arith.constant 0 : index
    %70 = vector.load %arg9[%c48_50, %c0_51] : memref<128x128xf32, #tpu.memory_space<vmem>>, vector<8x128xf32>
    tpu.vector_store %arg9[%c48_50, %c0_51], %69 {strides = array<i32>} : memref<128x128xf32, #tpu.memory_space<vmem>>, vector<8x128xf32>,
    %c56 = arith.constant 56 : index
    %c0_52 = arith.constant 0 : index
    %71 = vector.load %arg10[%c56, %c0_52] : memref<64x128xf32, #tpu.memory_space<vmem>>, vector<8x128xf32>
    %72 = arith.addf %71, %13 : vector<8x128xf32>
    %73 = arith.truncf %69 : vector<8x128xf32> to vector<8x128xbf16>
    %cst_53 = arith.constant dense<0.000000e+00> : vector<8x128xf32>
    %74 = tpu.matmul %73, %18, %cst_53 {dimension_numbers = #tpu.dot_dimension_numbers<[1], [0], [0], [1], [0, 0, 1, 1], [], []>} : vector<8x128xbf16>, vector<128x128xbf16>, vector<8x128xf32> -> vector<8x128xf32>
    %75 = arith.addf %72, %74 : vector<8x128xf32>
    %76 = math.tanh %75 : vector<8x128xf32>
    %c56_54 = arith.constant 56 : index
    %c0_55 = arith.constant 0 : index
    %77 = vector.load %arg9[%c56_54, %c0_55] : memref<128x128xf32, #tpu.memory_space<vmem>>, vector<8x128xf32>
    tpu.vector_store %arg9[%c56_54, %c0_55], %76 {strides = array<i32>} : memref<128x128xf32, #tpu.memory_space<vmem>>, vector<8x128xf32>,
    return
  }
  func.func @transform_0(%arg0: i32) -> (i32, i32) {
    %c0_i32 = arith.constant 0 : i32
    %c0_i32_0 = arith.constant 0 : i32
    %c0_i32_1 = arith.constant 0 : i32
    return %c0_i32, %c0_i32_0 : i32, i32
  }
  func.func @transform_1(%arg0: i32) -> (i32, i32) {
    %c0_i32 = arith.constant 0 : i32
    %c0_i32_0 = arith.constant 0 : i32
    %c0_i32_1 = arith.constant 0 : i32
    return %c0_i32, %c0_i32_0 : i32, i32
  }
  func.func @transform_2(%arg0: i32) -> (i32, i32) {
    %c0_i32 = arith.constant 0 : i32
    %c0_i32_0 = arith.constant 0 : i32
    %c0_i32_1 = arith.constant 0 : i32
    return %c0_i32, %c0_i32_0 : i32, i32
  }
  func.func @transform_3(%arg0: i32) -> (i32, i32) {
    %c0_i32 = arith.constant 0 : i32
    %c0_i32_0 = arith.constant 0 : i32
    %c0_i32_1 = arith.constant 0 : i32
    return %c0_i32, %c0_i32_0 : i32, i32
  }
  func.func @transform_4(%arg0: i32) -> (i32, i32) {
    %c0_i32 = arith.constant 0 : i32
    %c0_i32_0 = arith.constant 0 : i32
    %c0_i32_1 = arith.constant 0 : i32
    return %c0_i32, %c0_i32_0 : i32, i32
  }
  func.func @transform_5(%arg0: i32) -> (i32, i32) {
    %c0_i32 = arith.constant 0 : i32
    %c0_i32_0 = arith.constant 0 : i32
    %c0_i32_1 = arith.constant 0 : i32
    return %c0_i32, %c0_i32_0 : i32, i32
  }
  func.func @transform_6(%arg0: i32) -> (i32, i32) {
    %c0_i32 = arith.constant 0 : i32
    %c0_i32_0 = arith.constant 0 : i32
    %c0_i32_1 = arith.constant 0 : i32
    return %c0_i32, %c0_i32_0 : i32, i32
  }
  func.func @transform_7(%arg0: i32) -> (i32, i32) {
    %c0_i32 = arith.constant 0 : i32
    %c0_i32_0 = arith.constant 0 : i32
    %c0_i32_1 = arith.constant 0 : i32
    return %c0_i32, %c0_i32_0 : i32, i32
  }
  func.func @transform_8(%arg0: i32) -> (i32, i32) {
    %c0_i32 = arith.constant 0 : i32
    %c0_i32_0 = arith.constant 0 : i32
    %c0_i32_1 = arith.constant 0 : i32
    return %c0_i32, %c0_i32_0 : i32, i32
  }
}

</mosaic_0001>

<llo_original>
// kernel: captioning_forward.3
$region0: #{captioning_forward.3}
  #allocation0 [shape = 'u32[]', space=smem, size = 0x4, offset = 0x4, fixed_abs, tag = 'smem constant byte address 0x4 - core index']
  #allocation1 [shape = 'u32[144,128]{1,0:T(1,128)}', space=vmem, size = 0x12000, scoped, tag = 'internal scratch']
  #allocation2 [shape = 'bf16[128,128]{1,0:T(8,128)(2,1)}', space=vmem, size = 0x8000, scoped, tag = 'scratch operand']
  %s0 = inlined_call_operand.vmem [shape: f32[128,128], index: 0, kind: input, shape index: {}]
  %s1 = inlined_call_operand.vmem [shape: bf16[128,128], index: 1, kind: input, shape index: {}]
  %s2 = inlined_call_operand.vmem [shape: f32[1,128], index: 2, kind: input, shape index: {}]
  %s3 = inlined_call_operand.vmem [shape: bf16[128,256], index: 3, kind: input, shape index: {}]
  %s4 = inlined_call_operand.vmem [shape: f32[1,256], index: 4, kind: input, shape index: {}]
  %s5 = inlined_call_operand.vmem [shape: f32[128,256], index: 5, kind: output, shape index: {}]
  %s6 = sld [smem:[#allocation0]]
  $region34: #{captioning_forward.3} parent=0
    _
  %s8 = ssub.s32 1, %s6
  %s9 = scalar_select 0, %s8, %s6
  // Predicated region
  $region2: #{captioning_forward.3} parent=0 // pred_check
    _
  $region3: #{captioning_forward.3} parent=0 // pred_check_branch
    %11 = sbr.rel (0) target = $region5
  $region4: #{captioning_forward.3} parent=0 // pred_region
    _
  $region5: #{captioning_forward.3} parent=0 // pred_fallthru
    _
  // Predicated region
  $region6: #{captioning_forward.3} parent=0 // pred_check
    _
  $region7: #{captioning_forward.3} parent=0 // pred_check_branch
    %13 = sbr.rel (0) target = $region9
  $region8: #{captioning_forward.3} parent=0 // pred_region
    _
  $region9: #{captioning_forward.3} parent=0 // pred_fallthru
    _
  // Predicated region
  $region10: #{captioning_forward.3} parent=0 // pred_check
    _
  $region11: #{captioning_forward.3} parent=0 // pred_check_branch
    %15 = sbr.rel (0) target = $region13
  $region12: #{captioning_forward.3} parent=0 // pred_region
    _
  $region13: #{captioning_forward.3} parent=0 // pred_fallthru
    _
  // Predicated region
  $region14: #{captioning_forward.3} parent=0 // pred_check
    _
  $region15: #{captioning_forward.3} parent=0 // pred_check_branch
    %17 = sbr.rel (0) target = $region17
  $region16: #{captioning_forward.3} parent=0 // pred_region
    _
  $region17: #{captioning_forward.3} parent=0 // pred_fallthru
    _
  // Predicated region
  $region18: #{captioning_forward.3} parent=0 // pred_check
    _
  $region19: #{captioning_forward.3} parent=0 // pred_check_branch
    %19 = sbr.rel (0) target = $region21
  $region20: #{captioning_forward.3} parent=0 // pred_region
    _
  $region21: #{captioning_forward.3} parent=0 // pred_fallthru
    _
  %p21 = scmp.eq.s32.totalorder 0, 0
  // Predicated region
  $region22: #{captioning_forward.3} parent=0 // pred_check
    %p22 = pneg %p21
  $region23: #{captioning_forward.3} parent=0 // pred_check_branch
    %24 = sbr.rel (%p22) target = $region25
  $region24: #{captioning_forward.3} parent=0 // pred_region
    %v25 = vld [vmem:[%s0] sm:$0xff]
    %v26 = vld [vmem:[%s0 + $0x8] sm:$0xff]
    %v27 = vld [vmem:[%s0 + $0x10] sm:$0xff]
    %v28 = vld [vmem:[%s0 + $0x18] sm:$0xff]
    %v29 = vld [vmem:[%s0 + $0x20] sm:$0xff]
    %v30 = vld [vmem:[%s0 + $0x28] sm:$0xff]
    %v31 = vld [vmem:[%s0 + $0x30] sm:$0xff]
    %v32 = vld [vmem:[%s0 + $0x38] sm:$0xff]
    %v33 = vld [vmem:[%s0 + $0x40] sm:$0xff]
    %v34 = vld [vmem:[%s0 + $0x48] sm:$0xff]
    %v35 = vld [vmem:[%s0 + $0x50] sm:$0xff]
    %v36 = vld [vmem:[%s0 + $0x58] sm:$0xff]
    %v37 = vld [vmem:[%s0 + $0x60] sm:$0xff]
    %v38 = vld [vmem:[%s0 + $0x68] sm:$0xff]
    %v39 = vld [vmem:[%s0 + $0x70] sm:$0xff]
    %v40 = vld [vmem:[%s0 + $0x78] sm:$0xff]
    %v41 = vpack.c.bf16 %v26, %v25
    %v42 = vpack.c.bf16 %v28, %v27
    %v43 = vpack.c.bf16 %v30, %v29
    %v44 = vpack.c.bf16 %v32, %v31
    %v45 = vpack.c.bf16 %v34, %v33
    %v46 = vpack.c.bf16 %v36, %v35
    %v47 = vpack.c.bf16 %v38, %v37
    %v48 = vpack.c.bf16 %v40, %v39
    %v49 = vld [vmem:[%s1] sm:$0xf]
    %v50 = vld [vmem:[%s1 + $0x4] sm:$0xf]
    %v51 = vld [vmem:[%s1 + $0x8] sm:$0xf]
    %v52 = vld [vmem:[%s1 + $0xc] sm:$0xf]
    %v53 = vld [vmem:[%s1 + $0x10] sm:$0xf]
    %v54 = vld [vmem:[%s1 + $0x14] sm:$0xf]
    %v55 = vld [vmem:[%s1 + $0x18] sm:$0xf]
    %v56 = vld [vmem:[%s1 + $0x1c] sm:$0xf]
    %v57 = vld [vmem:[%s1 + $0x20] sm:$0xf]
    %v58 = vld [vmem:[%s1 + $0x24] sm:$0xf]
    %v59 = vld [vmem:[%s1 + $0x28] sm:$0xf]
    %v60 = vld [vmem:[%s1 + $0x2c] sm:$0xf]
    %v61 = vld [vmem:[%s1 + $0x30] sm:$0xf]
    %v62 = vld [vmem:[%s1 + $0x34] sm:$0xf]
    %v63 = vld [vmem:[%s1 + $0x38] sm:$0xf]
    %v64 = vld [vmem:[%s1 + $0x3c] sm:$0xf]
    %v65 = vld [vmem:[%s2] sm:$0x1]
    %v67 = vlaneseq
    %v68 = vshrl.u32 %v67, 7
    %v69 = vsub.s32 0, %v68
    %v70 = vrot.slane %v65, %v69
    %v88 = vunpack.c.l.b16 %v49
    %v89 = vunpack.c.l.b16 %v50
    %v90 = vunpack.c.l.b16 %v51
    %v91 = vunpack.c.l.b16 %v52
    %v92 = vunpack.c.l.b16 %v53
    %v93 = vunpack.c.l.b16 %v54
    %v94 = vunpack.c.l.b16 %v55
    %v95 = vunpack.c.l.b16 %v56
    %v96 = vunpack.c.l.b16 %v57
    %v97 = vunpack.c.l.b16 %v58
    %v98 = vunpack.c.l.b16 %v59
    %v99 = vunpack.c.l.b16 %v60
    %v100 = vunpack.c.l.b16 %v61
    %v101 = vunpack.c.l.b16 %v62
    %v102 = vunpack.c.l.b16 %v63
    %v103 = vunpack.c.l.b16 %v64
    %v104 = vpack.c.b16 %v89, %v88
    %v105 = vpack.c.b16 %v91, %v90
    %v106 = vpack.c.b16 %v93, %v92
    %v107 = vpack.c.b16 %v95, %v94
    %v108 = vpack.c.b16 %v97, %v96
    %v109 = vpack.c.b16 %v99, %v98
    %v110 = vpack.c.b16 %v101, %v100
    %v111 = vpack.c.b16 %v103, %v102
    %120 = vmatprep.subr.bf16.mxu0 0
    %121 = vmatpush1.bf16.msra.mxu0 %v111
    %122 = vmatprep.subr.bf16.mxu0 0
    %123 = vmatpush1.bf16.msra.mxu0 %v110
    %124 = vmatprep.subr.bf16.mxu0 0
    %125 = vmatpush1.bf16.msra.mxu0 %v109
    %126 = vmatprep.subr.bf16.mxu0 0
    %127 = vmatpush1.bf16.msra.mxu0 %v108
    %128 = vmatprep.subr.bf16.mxu0 0
    %129 = vmatpush1.bf16.msra.mxu0 %v107
    %130 = vmatprep.subr.bf16.mxu0 0
    %131 = vmatpush1.bf16.msra.mxu0 %v106
    %132 = vmatprep.subr.bf16.mxu0 0
    %133 = vmatpush1.bf16.msra.mxu0 %v105
    %134 = vmatprep.subr.bf16.mxu0 0
    %135 = vmatpush1.bf16.msra.mxu0 %v104
    %136 = vmatprep.subr.bf16.mxu0 0
    %137 = vmatpush2.bf16.msra.mxu0 0
    %138 = vmatprep.subr.bf16.mxu0 0
    %139 = vmatpush2.bf16.msra.mxu0 0
    %140 = vmatprep.subr.bf16.mxu0 0
    %141 = vmatpush2.bf16.msra.mxu0 0
    %142 = vmatprep.subr.bf16.mxu0 0
    %143 = vmatpush2.bf16.msra.mxu0 0
    %144 = vmatprep.subr.bf16.mxu0 0
    %145 = vmatpush2.bf16.msra.mxu0 0
    %146 = vmatprep.subr.bf16.mxu0 0
    %147 = vmatpush2.bf16.msra.mxu0 0
    %148 = vmatprep.subr.bf16.mxu0 0
    %149 = vmatpush2.bf16.msra.mxu0 0
    %150 = vmatprep.subr.bf16.mxu0 0
    %151 = vmatpush2.bf16.msra.mxu0 0
    %152 = vmatprep.mubr.bf16.mxu0 0
    %153 = vmatmul.mubr.bf16.gmra.mxu0 %v41
    %v154 = vpop.f32.mrf.mxu0
    %v155 = vadd.f32 %v70, %v154
    %v156 = vpop.f32.mrf.mxu0
    %v157 = vpop.f32.mrf.mxu0
    %v158 = vadd.f32 %v70, %v157
    %v159 = vpop.f32.mrf.mxu0
    %160 = vmatprep.mubr.bf16.mxu0 0
    %161 = vmatmul.mubr.bf16.gmra.mxu0 %v42
    %v162 = vpop.f32.mrf.mxu0
    %v163 = vadd.f32 %v70, %v162
    %v164 = vpop.f32.mrf.mxu0
    %v165 = vpop.f32.mrf.mxu0
    %v166 = vadd.f32 %v70, %v165
    %v167 = vpop.f32.mrf.mxu0
    %168 = vmatprep.mubr.bf16.mxu0 0
    %169 = vmatmul.mubr.bf16.gmra.mxu0 %v43
    %v170 = vpop.f32.mrf.mxu0
    %v171 = vadd.f32 %v70, %v170
    %v172 = vpop.f32.mrf.mxu0
    %v173 = vpop.f32.mrf.mxu0
    %v174 = vadd.f32 %v70, %v173
    %v175 = vpop.f32.mrf.mxu0
    %176 = vmatprep.mubr.bf16.mxu0 0
    %177 = vmatmul.mubr.bf16.gmra.mxu0 %v44
    %v178 = vpop.f32.mrf.mxu0
    %v179 = vadd.f32 %v70, %v178
    %v180 = vpop.f32.mrf.mxu0
    %v181 = vpop.f32.mrf.mxu0
    %v182 = vadd.f32 %v70, %v181
    %v183 = vpop.f32.mrf.mxu0
    %184 = vmatprep.mubr.bf16.mxu0 0
    %185 = vmatmul.mubr.bf16.gmra.mxu0 %v45
    %v186 = vpop.f32.mrf.mxu0
    %v187 = vadd.f32 %v70, %v186
    %v188 = vpop.f32.mrf.mxu0
    %v189 = vpop.f32.mrf.mxu0
    %v190 = vadd.f32 %v70, %v189
    %v191 = vpop.f32.mrf.mxu0
    %192 = vmatprep.mubr.bf16.mxu0 0
    %193 = vmatmul.mubr.bf16.gmra.mxu0 %v46
    %v194 = vpop.f32.mrf.mxu0
    %v195 = vadd.f32 %v70, %v194
    %v196 = vpop.f32.mrf.mxu0
    %v197 = vpop.f32.mrf.mxu0
    %v198 = vadd.f32 %v70, %v197
    %v199 = vpop.f32.mrf.mxu0
    %200 = vmatprep.mubr.bf16.mxu0 0
    %201 = vmatmul.mubr.bf16.gmra.mxu0 %v47
    %v202 = vpop.f32.mrf.mxu0
    %v203 = vadd.f32 %v70, %v202
    %v204 = vpop.f32.mrf.mxu0
    %v205 = vpop.f32.mrf.mxu0
    %v206 = vadd.f32 %v70, %v205
    %v207 = vpop.f32.mrf.mxu0
    %208 = vmatprep.mubr.bf16.mxu0 0
    %209 = vmatmul.mubr.bf16.gmra.mxu0 %v48
    %v210 = vpop.f32.mrf.mxu0
    %v211 = vadd.f32 %v70, %v210
    %v212 = vpop.f32.mrf.mxu0
    %v213 = vpop.f32.mrf.mxu0
    %v214 = vadd.f32 %v70, %v213
    %v215 = vpop.f32.mrf.mxu0
    %216 = vdwg.mxu0
    %v217 = vmax.f32 %v155, 0.0
    %v218 = vmax.f32 %v158, 0.0
    %v219 = vmax.f32 %v163, 0.0
    %v220 = vmax.f32 %v166, 0.0
    %v221 = vmax.f32 %v171, 0.0
    %v222 = vmax.f32 %v174, 0.0
    %v223 = vmax.f32 %v179, 0.0
    %v224 = vmax.f32 %v182, 0.0
    %v225 = vmax.f32 %v187, 0.0
    %v226 = vmax.f32 %v190, 0.0
    %v227 = vmax.f32 %v195, 0.0
    %v228 = vmax.f32 %v198, 0.0
    %v229 = vmax.f32 %v203, 0.0
    %v230 = vmax.f32 %v206, 0.0
    %v231 = vmax.f32 %v211, 0.0
    %v232 = vmax.f32 %v214, 0.0
    %v233 = vpack.c.bf16 %v218, %v217
    %v234 = vpack.c.bf16 %v220, %v219
    %v235 = vpack.c.bf16 %v222, %v221
    %v236 = vpack.c.bf16 %v224, %v223
    %v237 = vpack.c.bf16 %v226, %v225
    %v238 = vpack.c.bf16 %v228, %v227
    %v239 = vpack.c.bf16 %v230, %v229
    %v240 = vpack.c.bf16 %v232, %v231
    %v249 = vunpack.c.l.b16 %v233
    %v250 = vunpack.c.h.b16 %v233
    %v251 = vunpack.c.l.b16 %v234
    %v252 = vunpack.c.h.b16 %v234
    %v253 = vunpack.c.l.b16 %v235
    %v254 = vunpack.c.h.b16 %v235
    %v255 = vunpack.c.l.b16 %v236
    %v256 = vunpack.c.h.b16 %v236
    %v257 = vunpack.c.l.b16 %v237
    %v258 = vunpack.c.h.b16 %v237
    %v259 = vunpack.c.l.b16 %v238
    %v260 = vunpack.c.h.b16 %v238
    %v261 = vunpack.c.l.b16 %v239
    %v262 = vunpack.c.h.b16 %v239
    %v263 = vunpack.c.l.b16 %v240
    %v264 = vunpack.c.h.b16 %v240
    %v265 = vpack.c.b16 %v249, %v249
    %v266 = vpack.c.b16 %v250, %v250
    %v267 = vpack.c.b16 %v251, %v251
    %v268 = vpack.c.b16 %v252, %v252
    %v269 = vpack.c.b16 %v253, %v253
    %v270 = vpack.c.b16 %v254, %v254
    %v271 = vpack.c.b16 %v255, %v255
    %v272 = vpack.c.b16 %v256, %v256
    %v273 = vpack.c.b16 %v257, %v257
    %v274 = vpack.c.b16 %v258, %v258
    %v275 = vpack.c.b16 %v259, %v259
    %v276 = vpack.c.b16 %v260, %v260
    %v277 = vpack.c.b16 %v261, %v261
    %v278 = vpack.c.b16 %v262, %v262
    %v279 = vpack.c.b16 %v263, %v263
    %v280 = vpack.c.b16 %v264, %v264
    %297 = vst [vmem:[#allocation2] sm:$0xf] %v265
    %298 = vst [vmem:[#allocation2 + $0x4] sm:$0xf] %v266
    %299 = vst [vmem:[#allocation2 + $0x8] sm:$0xf] %v267
    %300 = vst [vmem:[#allocation2 + $0xc] sm:$0xf] %v268
    %301 = vst [vmem:[#allocation2 + $0x10] sm:$0xf] %v269
    %302 = vst [vmem:[#allocation2 + $0x14] sm:$0xf] %v270
    %303 = vst [vmem:[#allocation2 + $0x18] sm:$0xf] %v271
    %304 = vst [vmem:[#allocation2 + $0x1c] sm:$0xf] %v272
    %305 = vst [vmem:[#allocation2 + $0x20] sm:$0xf] %v273
    %306 = vst [vmem:[#allocation2 + $0x24] sm:$0xf] %v274
    %307 = vst [vmem:[#allocation2 + $0x28] sm:$0xf] %v275
    %308 = vst [vmem:[#allocation2 + $0x2c] sm:$0xf] %v276
    %309 = vst [vmem:[#allocation2 + $0x30] sm:$0xf] %v277
    %310 = vst [vmem:[#allocation2 + $0x34] sm:$0xf] %v278
    %311 = vst [vmem:[#allocation2 + $0x38] sm:$0xf] %v279
    %312 = vst [vmem:[#allocation2 + $0x3c] sm:$0xf] %v280
  $region25: #{captioning_forward.3} parent=0 // pred_fallthru
    _
  %v313 = vld [vmem:[#allocation2] sm:$0xf]
  %v314 = vld [vmem:[#allocation2 + $0x4] sm:$0xf]
  %v315 = vld [vmem:[#allocation2 + $0x8] sm:$0xf]
  %v316 = vld [vmem:[#allocation2 + $0xc] sm:$0xf]
  %v317 = vld [vmem:[#allocation2 + $0x10] sm:$0xf]
  %v318 = vld [vmem:[#allocation2 + $0x14] sm:$0xf]
  %v319 = vld [vmem:[#allocation2 + $0x18] sm:$0xf]
  %v320 = vld [vmem:[#allocation2 + $0x1c] sm:$0xf]
  %v321 = vld [vmem:[#allocation2 + $0x20] sm:$0xf]
  %v322 = vld [vmem:[#allocation2 + $0x24] sm:$0xf]
  %v323 = vld [vmem:[#allocation2 + $0x28] sm:$0xf]
  %v324 = vld [vmem:[#allocation2 + $0x2c] sm:$0xf]
  %v325 = vld [vmem:[#allocation2 + $0x30] sm:$0xf]
  %v326 = vld [vmem:[#allocation2 + $0x34] sm:$0xf]
  %v327 = vld [vmem:[#allocation2 + $0x38] sm:$0xf]
  %v328 = vld [vmem:[#allocation2 + $0x3c] sm:$0xf]
  %v329 = vld [vmem:[%s3] sm:$0xff]
  %v330 = vld [vmem:[%s3 + $0x8] sm:$0xff]
  %v331 = vld [vmem:[%s3 + $0x10] sm:$0xff]
  %v332 = vld [vmem:[%s3 + $0x18] sm:$0xff]
  %v333 = vld [vmem:[%s3 + $0x20] sm:$0xff]
  %v334 = vld [vmem:[%s3 + $0x28] sm:$0xff]
  %v335 = vld [vmem:[%s3 + $0x30] sm:$0xff]
  %v336 = vld [vmem:[%s3 + $0x38] sm:$0xff]
  %v337 = vld [vmem:[%s3 + $0x40] sm:$0xff]
  %v338 = vld [vmem:[%s3 + $0x48] sm:$0xff]
  %v339 = vld [vmem:[%s3 + $0x50] sm:$0xff]
  %v340 = vld [vmem:[%s3 + $0x58] sm:$0xff]
  %v341 = vld [vmem:[%s3 + $0x60] sm:$0xff]
  %v342 = vld [vmem:[%s3 + $0x68] sm:$0xff]
  %v343 = vld [vmem:[%s3 + $0x70] sm:$0xff]
  %v344 = vld [vmem:[%s3 + $0x78] sm:$0xff]
  %v345 = vld [vmem:[%s4] sm:$0x3]
  %v347 = vlaneseq
  %v348 = vshrl.u32 %v347, 7
  %v349 = vsub.s32 0, %v348
  %v350 = vrot.slane %v345, %v349
  %v351 = vlaneseq
  %v352 = vshrl.u32 %v351, 7
  %v353 = vsub.s32 1, %v352
  %v354 = vrot.slane %v345, %v353
  %v373 = vunpack.c.l.b16 %v313
  %v374 = vunpack.c.l.b16 %v314
  %v375 = vunpack.c.l.b16 %v315
  %v376 = vunpack.c.l.b16 %v316
  %v377 = vunpack.c.l.b16 %v317
  %v378 = vunpack.c.l.b16 %v318
  %v379 = vunpack.c.l.b16 %v319
  %v380 = vunpack.c.l.b16 %v320
  %v381 = vunpack.c.l.b16 %v321
  %v382 = vunpack.c.l.b16 %v322
  %v383 = vunpack.c.l.b16 %v323
  %v384 = vunpack.c.l.b16 %v324
  %v385 = vunpack.c.l.b16 %v325
  %v386 = vunpack.c.l.b16 %v326
  %v387 = vunpack.c.l.b16 %v327
  %v388 = vunpack.c.l.b16 %v328
  %v389 = vpack.c.b16 %v374, %v373
  %v390 = vpack.c.b16 %v376, %v375
  %v391 = vpack.c.b16 %v378, %v377
  %v392 = vpack.c.b16 %v380, %v379
  %v393 = vpack.c.b16 %v382, %v381
  %v394 = vpack.c.b16 %v384, %v383
  %v395 = vpack.c.b16 %v386, %v385
  %v396 = vpack.c.b16 %v388, %v387
  %v421 = vunpack.c.l.b16 %v329
  %v422 = vunpack.c.h.b16 %v329
  %v423 = vunpack.c.l.b16 %v330
  %v424 = vunpack.c.h.b16 %v330
  %v425 = vunpack.c.l.b16 %v331
  %v426 = vunpack.c.h.b16 %v331
  %v427 = vunpack.c.l.b16 %v332
  %v428 = vunpack.c.h.b16 %v332
  %v429 = vunpack.c.l.b16 %v333
  %v430 = vunpack.c.h.b16 %v333
  %v431 = vunpack.c.l.b16 %v334
  %v432 = vunpack.c.h.b16 %v334
  %v433 = vunpack.c.l.b16 %v335
  %v434 = vunpack.c.h.b16 %v335
  %v435 = vunpack.c.l.b16 %v336
  %v436 = vunpack.c.h.b16 %v336
  %v437 = vunpack.c.l.b16 %v337
  %v438 = vunpack.c.h.b16 %v337
  %v439 = vunpack.c.l.b16 %v338
  %v440 = vunpack.c.h.b16 %v338
  %v441 = vunpack.c.l.b16 %v339
  %v442 = vunpack.c.h.b16 %v339
  %v443 = vunpack.c.l.b16 %v340
  %v444 = vunpack.c.h.b16 %v340
  %v445 = vunpack.c.l.b16 %v341
  %v446 = vunpack.c.h.b16 %v341
  %v447 = vunpack.c.l.b16 %v342
  %v448 = vunpack.c.h.b16 %v342
  %v449 = vunpack.c.l.b16 %v343
  %v450 = vunpack.c.h.b16 %v343
  %v451 = vunpack.c.l.b16 %v344
  %v452 = vunpack.c.h.b16 %v344
  %v453 = vpack.c.b16 %v423, %v421
  %v454 = vpack.c.b16 %v424, %v422
  %v455 = vpack.c.b16 %v427, %v425
  %v456 = vpack.c.b16 %v428, %v426
  %v457 = vpack.c.b16 %v431, %v429
  %v458 = vpack.c.b16 %v432, %v430
  %v459 = vpack.c.b16 %v435, %v433
  %v460 = vpack.c.b16 %v436, %v434
  %v461 = vpack.c.b16 %v439, %v437
  %v462 = vpack.c.b16 %v440, %v438
  %v463 = vpack.c.b16 %v443, %v441
  %v464 = vpack.c.b16 %v444, %v442
  %v465 = vpack.c.b16 %v447, %v445
  %v466 = vpack.c.b16 %v448, %v446
  %v467 = vpack.c.b16 %v451, %v449
  %v468 = vpack.c.b16 %v452, %v450
  %485 = vmatprep.subr.bf16.mxu0 %v468
  %486 = vmatpush1.bf16.msra.mxu0 %v467
  %487 = vmatprep.subr.bf16.mxu0 %v466
  %488 = vmatpush1.bf16.msra.mxu0 %v465
  %489 = vmatprep.subr.bf16.mxu0 %v464
  %490 = vmatpush1.bf16.msra.mxu0 %v463
  %491 = vmatprep.subr.bf16.mxu0 %v462
  %492 = vmatpush1.bf16.msra.mxu0 %v461
  %493 = vmatprep.subr.bf16.mxu0 %v460
  %494 = vmatpush1.bf16.msra.mxu0 %v459
  %495 = vmatprep.subr.bf16.mxu0 %v458
  %496 = vmatpush1.bf16.msra.mxu0 %v457
  %497 = vmatprep.subr.bf16.mxu0 %v456
  %498 = vmatpush1.bf16.msra.mxu0 %v455
  %499 = vmatprep.subr.bf16.mxu0 %v454
  %500 = vmatpush1.bf16.msra.mxu0 %v453
  %501 = vmatprep.subr.bf16.mxu0 0
  %502 = vmatpush2.bf16.msra.mxu0 0
  %503 = vmatprep.subr.bf16.mxu0 0
  %504 = vmatpush2.bf16.msra.mxu0 0
  %505 = vmatprep.subr.bf16.mxu0 0
  %506 = vmatpush2.bf16.msra.mxu0 0
  %507 = vmatprep.subr.bf16.mxu0 0
  %508 = vmatpush2.bf16.msra.mxu0 0
  %509 = vmatprep.subr.bf16.mxu0 0
  %510 = vmatpush2.bf16.msra.mxu0 0
  %511 = vmatprep.subr.bf16.mxu0 0
  %512 = vmatpush2.bf16.msra.mxu0 0
  %513 = vmatprep.subr.bf16.mxu0 0
  %514 = vmatpush2.bf16.msra.mxu0 0
  %515 = vmatprep.subr.bf16.mxu0 0
  %516 = vmatpush2.bf16.msra.mxu0 0
  %517 = vmatprep.mubr.bf16.mxu0 0
  %518 = vmatmul.mubr.bf16.gmra.mxu0 %v389
  %v519 = vpop.f32.mrf.mxu0
  %v520 = vadd.f32 %v350, %v519
  %v521 = vpop.f32.mrf.mxu0
  %v522 = vadd.f32 %v354, %v521
  %v523 = vpop.f32.mrf.mxu0
  %v524 = vadd.f32 %v350, %v523
  %v525 = vpop.f32.mrf.mxu0
  %v526 = vadd.f32 %v354, %v525
  %527 = vmatprep.mubr.bf16.mxu0 0
  %528 = vmatmul.mubr.bf16.gmra.mxu0 %v390
  %v529 = vpop.f32.mrf.mxu0
  %v530 = vadd.f32 %v350, %v529
  %v531 = vpop.f32.mrf.mxu0
  %v532 = vadd.f32 %v354, %v531
  %v533 = vpop.f32.mrf.mxu0
  %v534 = vadd.f32 %v350, %v533
  %v535 = vpop.f32.mrf.mxu0
  %v536 = vadd.f32 %v354, %v535
  %537 = vmatprep.mubr.bf16.mxu0 0
  %538 = vmatmul.mubr.bf16.gmra.mxu0 %v391
  %v539 = vpop.f32.mrf.mxu0
  %v540 = vadd.f32 %v350, %v539
  %v541 = vpop.f32.mrf.mxu0
  %v542 = vadd.f32 %v354, %v541
  %v543 = vpop.f32.mrf.mxu0
  %v544 = vadd.f32 %v350, %v543
  %v545 = vpop.f32.mrf.mxu0
  %v546 = vadd.f32 %v354, %v545
  %547 = vmatprep.mubr.bf16.mxu0 0
  %548 = vmatmul.mubr.bf16.gmra.mxu0 %v392
  %v549 = vpop.f32.mrf.mxu0
  %v550 = vadd.f32 %v350, %v549
  %v551 = vpop.f32.mrf.mxu0
  %v552 = vadd.f32 %v354, %v551
  %v553 = vpop.f32.mrf.mxu0
  %v554 = vadd.f32 %v350, %v553
  %v555 = vpop.f32.mrf.mxu0
  %v556 = vadd.f32 %v354, %v555
  %557 = vmatprep.mubr.bf16.mxu0 0
  %558 = vmatmul.mubr.bf16.gmra.mxu0 %v393
  %v559 = vpop.f32.mrf.mxu0
  %v560 = vadd.f32 %v350, %v559
  %v561 = vpop.f32.mrf.mxu0
  %v562 = vadd.f32 %v354, %v561
  %v563 = vpop.f32.mrf.mxu0
  %v564 = vadd.f32 %v350, %v563
  %v565 = vpop.f32.mrf.mxu0
  %v566 = vadd.f32 %v354, %v565
  %567 = vmatprep.mubr.bf16.mxu0 0
  %568 = vmatmul.mubr.bf16.gmra.mxu0 %v394
  %v569 = vpop.f32.mrf.mxu0
  %v570 = vadd.f32 %v350, %v569
  %v571 = vpop.f32.mrf.mxu0
  %v572 = vadd.f32 %v354, %v571
  %v573 = vpop.f32.mrf.mxu0
  %v574 = vadd.f32 %v350, %v573
  %v575 = vpop.f32.mrf.mxu0
  %v576 = vadd.f32 %v354, %v575
  %577 = vmatprep.mubr.bf16.mxu0 0
  %578 = vmatmul.mubr.bf16.gmra.mxu0 %v395
  %v579 = vpop.f32.mrf.mxu0
  %v580 = vadd.f32 %v350, %v579
  %v581 = vpop.f32.mrf.mxu0
  %v582 = vadd.f32 %v354, %v581
  %v583 = vpop.f32.mrf.mxu0
  %v584 = vadd.f32 %v350, %v583
  %v585 = vpop.f32.mrf.mxu0
  %v586 = vadd.f32 %v354, %v585
  %587 = vmatprep.mubr.bf16.mxu0 0
  %588 = vmatmul.mubr.bf16.gmra.mxu0 %v396
  %v589 = vpop.f32.mrf.mxu0
  %v590 = vadd.f32 %v350, %v589
  %v591 = vpop.f32.mrf.mxu0
  %v592 = vadd.f32 %v354, %v591
  %v593 = vpop.f32.mrf.mxu0
  %v594 = vadd.f32 %v350, %v593
  %v595 = vpop.f32.mrf.mxu0
  %v596 = vadd.f32 %v354, %v595
  %597 = vdwg.mxu0
  %598 = vst [vmem:[%s5] sm:$0xff] %v520
  %599 = vst [vmem:[%s5 + $0x8] sm:$0xff] %v522
  %600 = vst [vmem:[%s5 + $0x10] sm:$0xff] %v524
  %601 = vst [vmem:[%s5 + $0x18] sm:$0xff] %v526
  %602 = vst [vmem:[%s5 + $0x20] sm:$0xff] %v530
  %603 = vst [vmem:[%s5 + $0x28] sm:$0xff] %v532
  %604 = vst [vmem:[%s5 + $0x30] sm:$0xff] %v534
  %605 = vst [vmem:[%s5 + $0x38] sm:$0xff] %v536
  %606 = vst [vmem:[%s5 + $0x40] sm:$0xff] %v540
  %607 = vst [vmem:[%s5 + $0x48] sm:$0xff] %v542
  %608 = vst [vmem:[%s5 + $0x50] sm:$0xff] %v544
  %609 = vst [vmem:[%s5 + $0x58] sm:$0xff] %v546
  %610 = vst [vmem:[%s5 + $0x60] sm:$0xff] %v550
  %611 = vst [vmem:[%s5 + $0x68] sm:$0xff] %v552
  %612 = vst [vmem:[%s5 + $0x70] sm:$0xff] %v554
  %613 = vst [vmem:[%s5 + $0x78] sm:$0xff] %v556
  %614 = vst [vmem:[%s5 + $0x80] sm:$0xff] %v560
  %615 = vst [vmem:[%s5 + $0x88] sm:$0xff] %v562
  %616 = vst [vmem:[%s5 + $0x90] sm:$0xff] %v564
  %617 = vst [vmem:[%s5 + $0x98] sm:$0xff] %v566
  %618 = vst [vmem:[%s5 + $0xa0] sm:$0xff] %v570
  %619 = vst [vmem:[%s5 + $0xa8] sm:$0xff] %v572
  %620 = vst [vmem:[%s5 + $0xb0] sm:$0xff] %v574
  %621 = vst [vmem:[%s5 + $0xb8] sm:$0xff] %v576
  %622 = vst [vmem:[%s5 + $0xc0] sm:$0xff] %v580
  %623 = vst [vmem:[%s5 + $0xc8] sm:$0xff] %v582
  %624 = vst [vmem:[%s5 + $0xd0] sm:$0xff] %v584
  %625 = vst [vmem:[%s5 + $0xd8] sm:$0xff] %v586
  %626 = vst [vmem:[%s5 + $0xe0] sm:$0xff] %v590
  %627 = vst [vmem:[%s5 + $0xe8] sm:$0xff] %v592
  %628 = vst [vmem:[%s5 + $0xf0] sm:$0xff] %v594
  %629 = vst [vmem:[%s5 + $0xf8] sm:$0xff] %v596
  // Predicated region
  $region26: #{captioning_forward.3} parent=0 // pred_check
    _
  $region27: #{captioning_forward.3} parent=0 // pred_check_branch
    %631 = sbr.rel (0) target = $region29
  $region28: #{captioning_forward.3} parent=0 // pred_region
    _
  $region29: #{captioning_forward.3} parent=0 // pred_fallthru
    _
  // Predicated region
  $region30: #{captioning_forward.3} parent=0 // pred_check
    _
  $region31: #{captioning_forward.3} parent=0 // pred_check_branch
    %633 = sbr.rel (0) target = $region33
  $region32: #{captioning_forward.3} parent=0 // pred_region
    _
  $region33: #{captioning_forward.3} parent=0 // pred_fallthru
    _

// kernel: captioning_forward.2
$region0: #{captioning_forward.2}
  #allocation0 [shape = 'u32[]', space=smem, size = 0x4, offset = 0x4, fixed_abs, tag = 'smem constant byte address 0x4 - core index']
  #allocation1 [shape = 'u32[144,128]{1,0:T(1,128)}', space=vmem, size = 0x12000, scoped, tag = 'internal scratch']
  #allocation2 [shape = 'f32[64,128]{1,0:T(8,128)}', space=vmem, size = 0x8000, scoped, tag = 'scratch operand']
  %s0 = inlined_call_operand.vmem [shape: bf16[8,512], index: 0, kind: input, shape index: {}]
  %s1 = inlined_call_operand.vmem [shape: bf16[512,128], index: 1, kind: input, shape index: {}]
  %s2 = inlined_call_operand.vmem [shape: f32[1,128], index: 2, kind: input, shape index: {}]
  %s3 = inlined_call_operand.vmem [shape: bf16[128,128], index: 3, kind: input, shape index: {}]
  %s4 = inlined_call_operand.vmem [shape: f32[1,128], index: 4, kind: input, shape index: {}]
  %s5 = inlined_call_operand.vmem [shape: bf16[64,128], index: 5, kind: input, shape index: {}]
  %s6 = inlined_call_operand.vmem [shape: bf16[128,128], index: 6, kind: input, shape index: {}]
  %s7 = inlined_call_operand.vmem [shape: bf16[128,128], index: 7, kind: input, shape index: {}]
  %s8 = inlined_call_operand.vmem [shape: f32[128,128], index: 8, kind: output, shape index: {}]
  %s9 = sld [smem:[#allocation0]]
  $region42: #{captioning_forward.2} parent=0
    _
  %s11 = ssub.s32 1, %s9
  %s12 = scalar_select 0, %s11, %s9
  // Predicated region
  $region2: #{captioning_forward.2} parent=0 // pred_check
    _
  $region3: #{captioning_forward.2} parent=0 // pred_check_branch
    %14 = sbr.rel (0) target = $region5
  $region4: #{captioning_forward.2} parent=0 // pred_region
    _
  $region5: #{captioning_forward.2} parent=0 // pred_fallthru
    _
  // Predicated region
  $region6: #{captioning_forward.2} parent=0 // pred_check
    _
  $region7: #{captioning_forward.2} parent=0 // pred_check_branch
    %16 = sbr.rel (0) target = $region9
  $region8: #{captioning_forward.2} parent=0 // pred_region
    _
  $region9: #{captioning_forward.2} parent=0 // pred_fallthru
    _
  // Predicated region
  $region10: #{captioning_forward.2} parent=0 // pred_check
    _
  $region11: #{captioning_forward.2} parent=0 // pred_check_branch
    %18 = sbr.rel (0) target = $region13
  $region12: #{captioning_forward.2} parent=0 // pred_region
    _
  $region13: #{captioning_forward.2} parent=0 // pred_fallthru
    _
  // Predicated region
  $region14: #{captioning_forward.2} parent=0 // pred_check
    _
  $region15: #{captioning_forward.2} parent=0 // pred_check_branch
    %20 = sbr.rel (0) target = $region17
  $region16: #{captioning_forward.2} parent=0 // pred_region
    _
  $region17: #{captioning_forward.2} parent=0 // pred_fallthru
    _
  // Predicated region
  $region18: #{captioning_forward.2} parent=0 // pred_check
    _
  $region19: #{captioning_forward.2} parent=0 // pred_check_branch
    %22 = sbr.rel (0) target = $region21
  $region20: #{captioning_forward.2} parent=0 // pred_region
    _
  $region21: #{captioning_forward.2} parent=0 // pred_fallthru
    _
  // Predicated region
  $region22: #{captioning_forward.2} parent=0 // pred_check
    _
  $region23: #{captioning_forward.2} parent=0 // pred_check_branch
    %24 = sbr.rel (0) target = $region25
  $region24: #{captioning_forward.2} parent=0 // pred_region
    _
  $region25: #{captioning_forward.2} parent=0 // pred_fallthru
    _
  // Predicated region
  $region26: #{captioning_forward.2} parent=0 // pred_check
    _
  $region27: #{captioning_forward.2} parent=0 // pred_check_branch
    %26 = sbr.rel (0) target = $region29
  $region28: #{captioning_forward.2} parent=0 // pred_region
    _
  $region29: #{captioning_forward.2} parent=0 // pred_fallthru
    _
  // Predicated region
  $region30: #{captioning_forward.2} parent=0 // pred_check
    _
  $region31: #{captioning_forward.2} parent=0 // pred_check_branch
    %28 = sbr.rel (0) target = $region33
  $region32: #{captioning_forward.2} parent=0 // pred_region
    _
  $region33: #{captioning_forward.2} parent=0 // pred_fallthru
    _
  %v30 = vld [vmem:[%s0] sm:$0xff]
  %v31 = vld [vmem:[%s0 + $0x8] sm:$0xff]
  %v32 = vld [vmem:[%s1] sm:$0xf]
  %v33 = vld [vmem:[%s1 + $0x4] sm:$0xf]
  %v34 = vld [vmem:[%s1 + $0x8] sm:$0xf]
  %v35 = vld [vmem:[%s1 + $0xc] sm:$0xf]
  %v36 = vld [vmem:[%s1 + $0x10] sm:$0xf]
  %v37 = vld [vmem:[%s1 + $0x14] sm:$0xf]
  %v38 = vld [vmem:[%s1 + $0x18] sm:$0xf]
  %v39 = vld [vmem:[%s1 + $0x1c] sm:$0xf]
  %v40 = vld [vmem:[%s1 + $0x20] sm:$0xf]
  %v41 = vld [vmem:[%s1 + $0x24] sm:$0xf]
  %v42 = vld [vmem:[%s1 + $0x28] sm:$0xf]
  %v43 = vld [vmem:[%s1 + $0x2c] sm:$0xf]
  %v44 = vld [vmem:[%s1 + $0x30] sm:$0xf]
  %v45 = vld [vmem:[%s1 + $0x34] sm:$0xf]
  %v46 = vld [vmem:[%s1 + $0x38] sm:$0xf]
  %v47 = vld [vmem:[%s1 + $0x3c] sm:$0xf]
  %v48 = vld [vmem:[%s1 + $0x40] sm:$0xf]
  %v49 = vld [vmem:[%s1 + $0x44] sm:$0xf]
  %v50 = vld [vmem:[%s1 + $0x48] sm:$0xf]
  %v51 = vld [vmem:[%s1 + $0x4c] sm:$0xf]
  %v52 = vld [vmem:[%s1 + $0x50] sm:$0xf]
  %v53 = vld [vmem:[%s1 + $0x54] sm:$0xf]
  %v54 = vld [vmem:[%s1 + $0x58] sm:$0xf]
  %v55 = vld [vmem:[%s1 + $0x5c] sm:$0xf]
  %v56 = vld [vmem:[%s1 + $0x60] sm:$0xf]
  %v57 = vld [vmem:[%s1 + $0x64] sm:$0xf]
  %v58 = vld [vmem:[%s1 + $0x68] sm:$0xf]
  %v59 = vld [vmem:[%s1 + $0x6c] sm:$0xf]
  %v60 = vld [vmem:[%s1 + $0x70] sm:$0xf]
  %v61 = vld [vmem:[%s1 + $0x74] sm:$0xf]
  %v62 = vld [vmem:[%s1 + $0x78] sm:$0xf]
  %v63 = vld [vmem:[%s1 + $0x7c] sm:$0xf]
  %v64 = vld [vmem:[%s1 + $0x80] sm:$0xf]
  %v65 = vld [vmem:[%s1 + $0x84] sm:$0xf]
  %v66 = vld [vmem:[%s1 + $0x88] sm:$0xf]
  %v67 = vld [vmem:[%s1 + $0x8c] sm:$0xf]
  %v68 = vld [vmem:[%s1 + $0x90] sm:$0xf]
  %v69 = vld [vmem:[%s1 + $0x94] sm:$0xf]
  %v70 = vld [vmem:[%s1 + $0x98] sm:$0xf]
  %v71 = vld [vmem:[%s1 + $0x9c] sm:$0xf]
  %v72 = vld [vmem:[%s1 + $0xa0] sm:$0xf]
  %v73 = vld [vmem:[%s1 + $0xa4] sm:$0xf]
  %v74 = vld [vmem:[%s1 + $0xa8] sm:$0xf]
  %v75 = vld [vmem:[%s1 + $0xac] sm:$0xf]
  %v76 = vld [vmem:[%s1 + $0xb0] sm:$0xf]
  %v77 = vld [vmem:[%s1 + $0xb4] sm:$0xf]
  %v78 = vld [vmem:[%s1 + $0xb8] sm:$0xf]
  %v79 = vld [vmem:[%s1 + $0xbc] sm:$0xf]
  %v80 = vld [vmem:[%s1 + $0xc0] sm:$0xf]
  %v81 = vld [vmem:[%s1 + $0xc4] sm:$0xf]
  %v82 = vld [vmem:[%s1 + $0xc8] sm:$0xf]
  %v83 = vld [vmem:[%s1 + $0xcc] sm:$0xf]
  %v84 = vld [vmem:[%s1 + $0xd0] sm:$0xf]
  %v85 = vld [vmem:[%s1 + $0xd4] sm:$0xf]
  %v86 = vld [vmem:[%s1 + $0xd8] sm:$0xf]
  %v87 = vld [vmem:[%s1 + $0xdc] sm:$0xf]
  %v88 = vld [vmem:[%s1 + $0xe0] sm:$0xf]
  %v89 = vld [vmem:[%s1 + $0xe4] sm:$0xf]
  %v90 = vld [vmem:[%s1 + $0xe8] sm:$0xf]
  %v91 = vld [vmem:[%s1 + $0xec] sm:$0xf]
  %v92 = vld [vmem:[%s1 + $0xf0] sm:$0xf]
  %v93 = vld [vmem:[%s1 + $0xf4] sm:$0xf]
  %v94 = vld [vmem:[%s1 + $0xf8] sm:$0xf]
  %v95 = vld [vmem:[%s1 + $0xfc] sm:$0xf]
  %v96 = vld [vmem:[%s2] sm:$0x1]
  %v98 = vlaneseq
  %v99 = vshrl.u32 %v98, 7
  %v100 = vsub.s32 0, %v99
  %v101 = vrot.slane %v96, %v100
  %v105 = vunpack.c.l.b16 %v30
  %v106 = vunpack.c.h.b16 %v30
  %v107 = vunpack.c.l.b16 %v31
  %v108 = vunpack.c.h.b16 %v31
  %v109 = vpack.c.b16 %v105, %v105
  %v110 = vpack.c.b16 %v106, %v106
  %v111 = vpack.c.b16 %v107, %v107
  %v112 = vpack.c.b16 %v108, %v108
  %v181 = vunpack.c.l.b16 %v32
  %v182 = vunpack.c.l.b16 %v33
  %v183 = vunpack.c.l.b16 %v34
  %v184 = vunpack.c.l.b16 %v35
  %v185 = vunpack.c.l.b16 %v36
  %v186 = vunpack.c.l.b16 %v37
  %v187 = vunpack.c.l.b16 %v38
  %v188 = vunpack.c.l.b16 %v39
  %v189 = vunpack.c.l.b16 %v40
  %v190 = vunpack.c.l.b16 %v41
  %v191 = vunpack.c.l.b16 %v42
  %v192 = vunpack.c.l.b16 %v43
  %v193 = vunpack.c.l.b16 %v44
  %v194 = vunpack.c.l.b16 %v45
  %v195 = vunpack.c.l.b16 %v46
  %v196 = vunpack.c.l.b16 %v47
  %v197 = vunpack.c.l.b16 %v48
  %v198 = vunpack.c.l.b16 %v49
  %v199 = vunpack.c.l.b16 %v50
  %v200 = vunpack.c.l.b16 %v51
  %v201 = vunpack.c.l.b16 %v52
  %v202 = vunpack.c.l.b16 %v53
  %v203 = vunpack.c.l.b16 %v54
  %v204 = vunpack.c.l.b16 %v55
  %v205 = vunpack.c.l.b16 %v56
  %v206 = vunpack.c.l.b16 %v57
  %v207 = vunpack.c.l.b16 %v58
  %v208 = vunpack.c.l.b16 %v59
  %v209 = vunpack.c.l.b16 %v60
  %v210 = vunpack.c.l.b16 %v61
  %v211 = vunpack.c.l.b16 %v62
  %v212 = vunpack.c.l.b16 %v63
  %v213 = vunpack.c.l.b16 %v64
  %v214 = vunpack.c.l.b16 %v65
  %v215 = vunpack.c.l.b16 %v66
  %v216 = vunpack.c.l.b16 %v67
  %v217 = vunpack.c.l.b16 %v68
  %v218 = vunpack.c.l.b16 %v69
  %v219 = vunpack.c.l.b16 %v70
  %v220 = vunpack.c.l.b16 %v71
  %v221 = vunpack.c.l.b16 %v72
  %v222 = vunpack.c.l.b16 %v73
  %v223 = vunpack.c.l.b16 %v74
  %v224 = vunpack.c.l.b16 %v75
  %v225 = vunpack.c.l.b16 %v76
  %v226 = vunpack.c.l.b16 %v77
  %v227 = vunpack.c.l.b16 %v78
  %v228 = vunpack.c.l.b16 %v79
  %v229 = vunpack.c.l.b16 %v80
  %v230 = vunpack.c.l.b16 %v81
  %v231 = vunpack.c.l.b16 %v82
  %v232 = vunpack.c.l.b16 %v83
  %v233 = vunpack.c.l.b16 %v84
  %v234 = vunpack.c.l.b16 %v85
  %v235 = vunpack.c.l.b16 %v86
  %v236 = vunpack.c.l.b16 %v87
  %v237 = vunpack.c.l.b16 %v88
  %v238 = vunpack.c.l.b16 %v89
  %v239 = vunpack.c.l.b16 %v90
  %v240 = vunpack.c.l.b16 %v91
  %v241 = vunpack.c.l.b16 %v92
  %v242 = vunpack.c.l.b16 %v93
  %v243 = vunpack.c.l.b16 %v94
  %v244 = vunpack.c.l.b16 %v95
  %v245 = vpack.c.b16 %v182, %v181
  %v246 = vpack.c.b16 %v184, %v183
  %v247 = vpack.c.b16 %v186, %v185
  %v248 = vpack.c.b16 %v188, %v187
  %v249 = vpack.c.b16 %v190, %v189
  %v250 = vpack.c.b16 %v192, %v191
  %v251 = vpack.c.b16 %v194, %v193
  %v252 = vpack.c.b16 %v196, %v195
  %v253 = vpack.c.b16 %v198, %v197
  %v254 = vpack.c.b16 %v200, %v199
  %v255 = vpack.c.b16 %v202, %v201
  %v256 = vpack.c.b16 %v204, %v203
  %v257 = vpack.c.b16 %v206, %v205
  %v258 = vpack.c.b16 %v208, %v207
  %v259 = vpack.c.b16 %v210, %v209
  %v260 = vpack.c.b16 %v212, %v211
  %v261 = vpack.c.b16 %v214, %v213
  %v262 = vpack.c.b16 %v216, %v215
  %v263 = vpack.c.b16 %v218, %v217
  %v264 = vpack.c.b16 %v220, %v219
  %v265 = vpack.c.b16 %v222, %v221
  %v266 = vpack.c.b16 %v224, %v223
  %v267 = vpack.c.b16 %v226, %v225
  %v268 = vpack.c.b16 %v228, %v227
  %v269 = vpack.c.b16 %v230, %v229
  %v270 = vpack.c.b16 %v232, %v231
  %v271 = vpack.c.b16 %v234, %v233
  %v272 = vpack.c.b16 %v236, %v235
  %v273 = vpack.c.b16 %v238, %v237
  %v274 = vpack.c.b16 %v240, %v239
  %v275 = vpack.c.b16 %v242, %v241
  %v276 = vpack.c.b16 %v244, %v243
  %309 = vmatprep.subr.bf16.mxu0 0
  %310 = vmatpush1.bf16.msra.mxu0 %v252
  %311 = vmatprep.subr.bf16.mxu0 0
  %312 = vmatpush1.bf16.msra.mxu0 %v251
  %313 = vmatprep.subr.bf16.mxu0 0
  %314 = vmatpush1.bf16.msra.mxu0 %v250
  %315 = vmatprep.subr.bf16.mxu0 0
  %316 = vmatpush1.bf16.msra.mxu0 %v249
  %317 = vmatprep.subr.bf16.mxu0 0
  %318 = vmatpush1.bf16.msra.mxu0 %v248
  %319 = vmatprep.subr.bf16.mxu0 0
  %320 = vmatpush1.bf16.msra.mxu0 %v247
  %321 = vmatprep.subr.bf16.mxu0 0
  %322 = vmatpush1.bf16.msra.mxu0 %v246
  %323 = vmatprep.subr.bf16.mxu0 0
  %324 = vmatpush1.bf16.msra.mxu0 %v245
  %325 = vmatprep.subr.bf16.mxu0 0
  %326 = vmatpush2.bf16.msra.mxu0 %v260
  %327 = vmatprep.subr.bf16.mxu0 0
  %328 = vmatpush2.bf16.msra.mxu0 %v259
  %329 = vmatprep.subr.bf16.mxu0 0
  %330 = vmatpush2.bf16.msra.mxu0 %v258
  %331 = vmatprep.subr.bf16.mxu0 0
  %332 = vmatpush2.bf16.msra.mxu0 %v257
  %333 = vmatprep.subr.bf16.mxu0 0
  %334 = vmatpush2.bf16.msra.mxu0 %v256
  %335 = vmatprep.subr.bf16.mxu0 0
  %336 = vmatpush2.bf16.msra.mxu0 %v255
  %337 = vmatprep.subr.bf16.mxu0 0
  %338 = vmatpush2.bf16.msra.mxu0 %v254
  %339 = vmatprep.subr.bf16.mxu0 0
  %340 = vmatpush2.bf16.msra.mxu0 %v253
  %341 = vmatprep.mubr.bf16.mxu0 %v110
  %342 = vmatmul.mubr.bf16.gmra.mxu0 %v109
  %v343 = vpop.f32.mrf.mxu0
  %v344 = vadd.f32 %v101, %v343
  %v345 = vpop.f32.mrf.mxu0
  %v346 = vpop.f32.mrf.mxu0
  %v347 = vpop.f32.mrf.mxu0
  %348 = vdwg.mxu0
  %349 = vmatprep.subr.bf16.mxu0 0
  %350 = vmatpush1.bf16.msra.mxu0 %v268
  %351 = vmatprep.subr.bf16.mxu0 0
  %352 = vmatpush1.bf16.msra.mxu0 %v267
  %353 = vmatprep.subr.bf16.mxu0 0
  %354 = vmatpush1.bf16.msra.mxu0 %v266
  %355 = vmatprep.subr.bf16.mxu0 0
  %356 = vmatpush1.bf16.msra.mxu0 %v265
  %357 = vmatprep.subr.bf16.mxu0 0
  %358 = vmatpush1.bf16.msra.mxu0 %v264
  %359 = vmatprep.subr.bf16.mxu0 0
  %360 = vmatpush1.bf16.msra.mxu0 %v263
  %361 = vmatprep.subr.bf16.mxu0 0
  %362 = vmatpush1.bf16.msra.mxu0 %v262
  %363 = vmatprep.subr.bf16.mxu0 0
  %364 = vmatpush1.bf16.msra.mxu0 %v261
  %365 = vmatprep.subr.bf16.mxu0 0
  %366 = vmatpush2.bf16.msra.mxu0 %v276
  %367 = vmatprep.subr.bf16.mxu0 0
  %368 = vmatpush2.bf16.msra.mxu0 %v275
  %369 = vmatprep.subr.bf16.mxu0 0
  %370 = vmatpush2.bf16.msra.mxu0 %v274
  %371 = vmatprep.subr.bf16.mxu0 0
  %372 = vmatpush2.bf16.msra.mxu0 %v273
  %373 = vmatprep.subr.bf16.mxu0 0
  %374 = vmatpush2.bf16.msra.mxu0 %v272
  %375 = vmatprep.subr.bf16.mxu0 0
  %376 = vmatpush2.bf16.msra.mxu0 %v271
  %377 = vmatprep.subr.bf16.mxu0 0
  %378 = vmatpush2.bf16.msra.mxu0 %v270
  %379 = vmatprep.subr.bf16.mxu0 0
  %380 = vmatpush2.bf16.msra.mxu0 %v269
  %381 = vmatprep.mubr.bf16.mxu0 %v112
  %382 = vmatmul.mubr.bf16.gmra.mxu0 %v111
  %v383 = vpop.f32.mrf.mxu0
  %v384 = vadd.f32 %v344, %v383
  %v385 = vpop.f32.mrf.mxu0
  %v386 = vpop.f32.mrf.mxu0
  %v387 = vpop.f32.mrf.mxu0
  %388 = vdwg.mxu0
  %v389 = vmax.f32 %v384, 0.0
  %v390 = vpack.c.bf16 %v389, %v389
  %v391 = vld [vmem:[%s3] sm:$0xf]
  %v392 = vld [vmem:[%s3 + $0x4] sm:$0xf]
  %v393 = vld [vmem:[%s3 + $0x8] sm:$0xf]
  %v394 = vld [vmem:[%s3 + $0xc] sm:$0xf]
  %v395 = vld [vmem:[%s3 + $0x10] sm:$0xf]
  %v396 = vld [vmem:[%s3 + $0x14] sm:$0xf]
  %v397 = vld [vmem:[%s3 + $0x18] sm:$0xf]
  %v398 = vld [vmem:[%s3 + $0x1c] sm:$0xf]
  %v399 = vld [vmem:[%s3 + $0x20] sm:$0xf]
  %v400 = vld [vmem:[%s3 + $0x24] sm:$0xf]
  %v401 = vld [vmem:[%s3 + $0x28] sm:$0xf]
  %v402 = vld [vmem:[%s3 + $0x2c] sm:$0xf]
  %v403 = vld [vmem:[%s3 + $0x30] sm:$0xf]
  %v404 = vld [vmem:[%s3 + $0x34] sm:$0xf]
  %v405 = vld [vmem:[%s3 + $0x38] sm:$0xf]
  %v406 = vld [vmem:[%s3 + $0x3c] sm:$0xf]
  %v407 = vld [vmem:[%s4] sm:$0x1]
  %v409 = vlaneseq
  %v410 = vshrl.u32 %v409, 7
  %v411 = vsub.s32 0, %v410
  %v412 = vrot.slane %v407, %v411
  %v430 = vunpack.c.l.b16 %v391
  %v431 = vunpack.c.l.b16 %v392
  %v432 = vunpack.c.l.b16 %v393
  %v433 = vunpack.c.l.b16 %v394
  %v434 = vunpack.c.l.b16 %v395
  %v435 = vunpack.c.l.b16 %v396
  %v436 = vunpack.c.l.b16 %v397
  %v437 = vunpack.c.l.b16 %v398
  %v438 = vunpack.c.l.b16 %v399
  %v439 = vunpack.c.l.b16 %v400
  %v440 = vunpack.c.l.b16 %v401
  %v441 = vunpack.c.l.b16 %v402
  %v442 = vunpack.c.l.b16 %v403
  %v443 = vunpack.c.l.b16 %v404
  %v444 = vunpack.c.l.b16 %v405
  %v445 = vunpack.c.l.b16 %v406
  %v446 = vpack.c.b16 %v431, %v430
  %v447 = vpack.c.b16 %v433, %v432
  %v448 = vpack.c.b16 %v435, %v434
  %v449 = vpack.c.b16 %v437, %v436
  %v450 = vpack.c.b16 %v439, %v438
  %v451 = vpack.c.b16 %v441, %v440
  %v452 = vpack.c.b16 %v443, %v442
  %v453 = vpack.c.b16 %v445, %v444
  %462 = vmatprep.subr.bf16.mxu0 0
  %463 = vmatpush1.bf16.msra.mxu0 %v453
  %464 = vmatprep.subr.bf16.mxu0 0
  %465 = vmatpush1.bf16.msra.mxu0 %v452
  %466 = vmatprep.subr.bf16.mxu0 0
  %467 = vmatpush1.bf16.msra.mxu0 %v451
  %468 = vmatprep.subr.bf16.mxu0 0
  %469 = vmatpush1.bf16.msra.mxu0 %v450
  %470 = vmatprep.subr.bf16.mxu0 0
  %471 = vmatpush1.bf16.msra.mxu0 %v449
  %472 = vmatprep.subr.bf16.mxu0 0
  %473 = vmatpush1.bf16.msra.mxu0 %v448
  %474 = vmatprep.subr.bf16.mxu0 0
  %475 = vmatpush1.bf16.msra.mxu0 %v447
  %476 = vmatprep.subr.bf16.mxu0 0
  %477 = vmatpush1.bf16.msra.mxu0 %v446
  %478 = vmatprep.subr.bf16.mxu0 0
  %479 = vmatpush2.bf16.msra.mxu0 0
  %480 = vmatprep.subr.bf16.mxu0 0
  %481 = vmatpush2.bf16.msra.mxu0 0
  %482 = vmatprep.subr.bf16.mxu0 0
  %483 = vmatpush2.bf16.msra.mxu0 0
  %484 = vmatprep.subr.bf16.mxu0 0
  %485 = vmatpush2.bf16.msra.mxu0 0
  %486 = vmatprep.subr.bf16.mxu0 0
  %487 = vmatpush2.bf16.msra.mxu0 0
  %488 = vmatprep.subr.bf16.mxu0 0
  %489 = vmatpush2.bf16.msra.mxu0 0
  %490 = vmatprep.subr.bf16.mxu0 0
  %491 = vmatpush2.bf16.msra.mxu0 0
  %492 = vmatprep.subr.bf16.mxu0 0
  %493 = vmatpush2.bf16.msra.mxu0 0
  %494 = vmatprep.mubr.bf16.mxu0 0
  %495 = vmatmul.mubr.bf16.gmra.mxu0 %v390
  %v496 = vpop.f32.mrf.mxu0
  %v497 = vadd.f32 %v412, %v496
  %v498 = vpop.f32.mrf.mxu0
  %v499 = vpop.f32.mrf.mxu0
  %v500 = vpop.f32.mrf.mxu0
  %501 = vdwg.mxu0
  %v502 = vld [vmem:[%s5] sm:$0xf]
  %v503 = vld [vmem:[%s5 + $0x4] sm:$0xf]
  %v504 = vld [vmem:[%s5 + $0x8] sm:$0xf]
  %v505 = vld [vmem:[%s5 + $0xc] sm:$0xf]
  %v506 = vld [vmem:[%s5 + $0x10] sm:$0xf]
  %v507 = vld [vmem:[%s5 + $0x14] sm:$0xf]
  %v508 = vld [vmem:[%s5 + $0x18] sm:$0xf]
  %v509 = vld [vmem:[%s5 + $0x1c] sm:$0xf]
  %v510 = vld [vmem:[%s6] sm:$0xf]
  %v511 = vld [vmem:[%s6 + $0x4] sm:$0xf]
  %v512 = vld [vmem:[%s6 + $0x8] sm:$0xf]
  %v513 = vld [vmem:[%s6 + $0xc] sm:$0xf]
  %v514 = vld [vmem:[%s6 + $0x10] sm:$0xf]
  %v515 = vld [vmem:[%s6 + $0x14] sm:$0xf]
  %v516 = vld [vmem:[%s6 + $0x18] sm:$0xf]
  %v517 = vld [vmem:[%s6 + $0x1c] sm:$0xf]
  %v518 = vld [vmem:[%s6 + $0x20] sm:$0xf]
  %v519 = vld [vmem:[%s6 + $0x24] sm:$0xf]
  %v520 = vld [vmem:[%s6 + $0x28] sm:$0xf]
  %v521 = vld [vmem:[%s6 + $0x2c] sm:$0xf]
  %v522 = vld [vmem:[%s6 + $0x30] sm:$0xf]
  %v523 = vld [vmem:[%s6 + $0x34] sm:$0xf]
  %v524 = vld [vmem:[%s6 + $0x38] sm:$0xf]
  %v525 = vld [vmem:[%s6 + $0x3c] sm:$0xf]
  %v534 = vunpack.c.l.b16 %v502
  %v535 = vunpack.c.l.b16 %v503
  %v536 = vunpack.c.l.b16 %v504
  %v537 = vunpack.c.l.b16 %v505
  %v538 = vunpack.c.l.b16 %v506
  %v539 = vunpack.c.l.b16 %v507
  %v540 = vunpack.c.l.b16 %v508
  %v541 = vunpack.c.l.b16 %v509
  %v542 = vpack.c.b16 %v535, %v534
  %v543 = vpack.c.b16 %v537, %v536
  %v544 = vpack.c.b16 %v539, %v538
  %v545 = vpack.c.b16 %v541, %v540
  %v566 = vunpack.c.l.b16 %v510
  %v567 = vunpack.c.l.b16 %v511
  %v568 = vunpack.c.l.b16 %v512
  %v569 = vunpack.c.l.b16 %v513
  %v570 = vunpack.c.l.b16 %v514
  %v571 = vunpack.c.l.b16 %v515
  %v572 = vunpack.c.l.b16 %v516
  %v573 = vunpack.c.l.b16 %v517
  %v574 = vunpack.c.l.b16 %v518
  %v575 = vunpack.c.l.b16 %v519
  %v576 = vunpack.c.l.b16 %v520
  %v577 = vunpack.c.l.b16 %v521
  %v578 = vunpack.c.l.b16 %v522
  %v579 = vunpack.c.l.b16 %v523
  %v580 = vunpack.c.l.b16 %v524
  %v581 = vunpack.c.l.b16 %v525
  %v582 = vpack.c.b16 %v567, %v566
  %v583 = vpack.c.b16 %v569, %v568
  %v584 = vpack.c.b16 %v571, %v570
  %v585 = vpack.c.b16 %v573, %v572
  %v586 = vpack.c.b16 %v575, %v574
  %v587 = vpack.c.b16 %v577, %v576
  %v588 = vpack.c.b16 %v579, %v578
  %v589 = vpack.c.b16 %v581, %v580
  %598 = vmatprep.subr.bf16.mxu0 0
  %599 = vmatpush1.bf16.msra.mxu0 %v589
  %600 = vmatprep.subr.bf16.mxu0 0
  %601 = vmatpush1.bf16.msra.mxu0 %v588
  %602 = vmatprep.subr.bf16.mxu0 0
  %603 = vmatpush1.bf16.msra.mxu0 %v587
  %604 = vmatprep.subr.bf16.mxu0 0
  %605 = vmatpush1.bf16.msra.mxu0 %v586
  %606 = vmatprep.subr.bf16.mxu0 0
  %607 = vmatpush1.bf16.msra.mxu0 %v585
  %608 = vmatprep.subr.bf16.mxu0 0
  %609 = vmatpush1.bf16.msra.mxu0 %v584
  %610 = vmatprep.subr.bf16.mxu0 0
  %611 = vmatpush1.bf16.msra.mxu0 %v583
  %612 = vmatprep.subr.bf16.mxu0 0
  %613 = vmatpush1.bf16.msra.mxu0 %v582
  %614 = vmatprep.subr.bf16.mxu0 0
  %615 = vmatpush2.bf16.msra.mxu0 0
  %616 = vmatprep.subr.bf16.mxu0 0
  %617 = vmatpush2.bf16.msra.mxu0 0
  %618 = vmatprep.subr.bf16.mxu0 0
  %619 = vmatpush2.bf16.msra.mxu0 0
  %620 = vmatprep.subr.bf16.mxu0 0
  %621 = vmatpush2.bf16.msra.mxu0 0
  %622 = vmatprep.subr.bf16.mxu0 0
  %623 = vmatpush2.bf16.msra.mxu0 0
  %624 = vmatprep.subr.bf16.mxu0 0
  %625 = vmatpush2.bf16.msra.mxu0 0
  %626 = vmatprep.subr.bf16.mxu0 0
  %627 = vmatpush2.bf16.msra.mxu0 0
  %628 = vmatprep.subr.bf16.mxu0 0
  %629 = vmatpush2.bf16.msra.mxu0 0
  %630 = vmatprep.mubr.bf16.mxu0 0
  %631 = vmatmul.mubr.bf16.gmra.mxu0 %v542
  %v632 = vpop.f32.mrf.mxu0
  %v633 = vadd.f32 0.0, %v632
  %v634 = vpop.f32.mrf.mxu0
  %v635 = vpop.f32.mrf.mxu0
  %v636 = vadd.f32 0.0, %v635
  %v637 = vpop.f32.mrf.mxu0
  %638 = vmatprep.mubr.bf16.mxu0 0
  %639 = vmatmul.mubr.bf16.gmra.mxu0 %v543
  %v640 = vpop.f32.mrf.mxu0
  %v641 = vadd.f32 0.0, %v640
  %v642 = vpop.f32.mrf.mxu0
  %v643 = vpop.f32.mrf.mxu0
  %v644 = vadd.f32 0.0, %v643
  %v645 = vpop.f32.mrf.mxu0
  %646 = vmatprep.mubr.bf16.mxu0 0
  %647 = vmatmul.mubr.bf16.gmra.mxu0 %v544
  %v648 = vpop.f32.mrf.mxu0
  %v649 = vadd.f32 0.0, %v648
  %v650 = vpop.f32.mrf.mxu0
  %v651 = vpop.f32.mrf.mxu0
  %v652 = vadd.f32 0.0, %v651
  %v653 = vpop.f32.mrf.mxu0
  %654 = vmatprep.mubr.bf16.mxu0 0
  %655 = vmatmul.mubr.bf16.gmra.mxu0 %v545
  %v656 = vpop.f32.mrf.mxu0
  %v657 = vadd.f32 0.0, %v656
  %v658 = vpop.f32.mrf.mxu0
  %v659 = vpop.f32.mrf.mxu0
  %v660 = vadd.f32 0.0, %v659
  %v661 = vpop.f32.mrf.mxu0
  %662 = vdwg.mxu0
  %663 = vst [vmem:[#allocation2] sm:$0xff] %v633
  %664 = vst [vmem:[#allocation2 + $0x8] sm:$0xff] %v636
  %665 = vst [vmem:[#allocation2 + $0x10] sm:$0xff] %v641
  %666 = vst [vmem:[#allocation2 + $0x18] sm:$0xff] %v644
  %667 = vst [vmem:[#allocation2 + $0x20] sm:$0xff] %v649
  %668 = vst [vmem:[#allocation2 + $0x28] sm:$0xff] %v652
  %669 = vst [vmem:[#allocation2 + $0x30] sm:$0xff] %v657
  %670 = vst [vmem:[#allocation2 + $0x38] sm:$0xff] %v660
  %v671 = vld [vmem:[%s7] sm:$0xf]
  %v672 = vld [vmem:[%s7 + $0x4] sm:$0xf]
  %v673 = vld [vmem:[%s7 + $0x8] sm:$0xf]
  %v674 = vld [vmem:[%s7 + $0xc] sm:$0xf]
  %v675 = vld [vmem:[%s7 + $0x10] sm:$0xf]
  %v676 = vld [vmem:[%s7 + $0x14] sm:$0xf]
  %v677 = vld [vmem:[%s7 + $0x18] sm:$0xf]
  %v678 = vld [vmem:[%s7 + $0x1c] sm:$0xf]
  %v679 = vld [vmem:[%s7 + $0x20] sm:$0xf]
  %v680 = vld [vmem:[%s7 + $0x24] sm:$0xf]
  %v681 = vld [vmem:[%s7 + $0x28] sm:$0xf]
  %v682 = vld [vmem:[%s7 + $0x2c] sm:$0xf]
  %v683 = vld [vmem:[%s7 + $0x30] sm:$0xf]
  %v684 = vld [vmem:[%s7 + $0x34] sm:$0xf]
  %v685 = vld [vmem:[%s7 + $0x38] sm:$0xf]
  %v686 = vld [vmem:[%s7 + $0x3c] sm:$0xf]
  %687 = vst [vmem:[%s8 + $0x40] sm:$0xff] 0.0
  %688 = vst [vmem:[%s8 + $0x48] sm:$0xff] 0.0
  %689 = vst [vmem:[%s8 + $0x50] sm:$0xff] 0.0
  %690 = vst [vmem:[%s8 + $0x58] sm:$0xff] 0.0
  %691 = vst [vmem:[%s8 + $0x60] sm:$0xff] 0.0
  %692 = vst [vmem:[%s8 + $0x68] sm:$0xff] 0.0
  %693 = vst [vmem:[%s8 + $0x70] sm:$0xff] 0.0
  %694 = vst [vmem:[%s8 + $0x78] sm:$0xff] 0.0
  %v695 = vld [vmem:[#allocation2] sm:$0xff]
  %v696 = vadd.f32 %v695, %v497
  %v713 = vunpack.c.l.b16 %v671
  %v714 = vunpack.c.l.b16 %v672
  %v715 = vunpack.c.l.b16 %v673
  %v716 = vunpack.c.l.b16 %v674
  %v717 = vunpack.c.l.b16 %v675
  %v718 = vunpack.c.l.b16 %v676
  %v719 = vunpack.c.l.b16 %v677
  %v720 = vunpack.c.l.b16 %v678
  %v721 = vunpack.c.l.b16 %v679
  %v722 = vunpack.c.l.b16 %v680
  %v723 = vunpack.c.l.b16 %v681
  %v724 = vunpack.c.l.b16 %v682
  %v725 = vunpack.c.l.b16 %v683
  %v726 = vunpack.c.l.b16 %v684
  %v727 = vunpack.c.l.b16 %v685
  %v728 = vunpack.c.l.b16 %v686
  %v729 = vpack.c.b16 %v714, %v713
  %v730 = vpack.c.b16 %v716, %v715
  %v731 = vpack.c.b16 %v718, %v717
  %v732 = vpack.c.b16 %v720, %v719
  %v733 = vpack.c.b16 %v722, %v721
  %v734 = vpack.c.b16 %v724, %v723
  %v735 = vpack.c.b16 %v726, %v725
  %v736 = vpack.c.b16 %v728, %v727
  %745 = vmatprep.subr.bf16.mxu0 0
  %746 = vmatpush1.bf16.msra.mxu0 %v736
  %747 = vmatprep.subr.bf16.mxu0 0
  %748 = vmatpush1.bf16.msra.mxu0 %v735
  %749 = vmatprep.subr.bf16.mxu0 0
  %750 = vmatpush1.bf16.msra.mxu0 %v734
  %751 = vmatprep.subr.bf16.mxu0 0
  %752 = vmatpush1.bf16.msra.mxu0 %v733
  %753 = vmatprep.subr.bf16.mxu0 0
  %754 = vmatpush1.bf16.msra.mxu0 %v732
  %755 = vmatprep.subr.bf16.mxu0 0
  %756 = vmatpush1.bf16.msra.mxu0 %v731
  %757 = vmatprep.subr.bf16.mxu0 0
  %758 = vmatpush1.bf16.msra.mxu0 %v730
  %759 = vmatprep.subr.bf16.mxu0 0
  %760 = vmatpush1.bf16.msra.mxu0 %v729
  %761 = vmatprep.subr.bf16.mxu0 0
  %762 = vmatpush2.bf16.msra.mxu0 0
  %763 = vmatprep.subr.bf16.mxu0 0
  %764 = vmatpush2.bf16.msra.mxu0 0
  %765 = vmatprep.subr.bf16.mxu0 0
  %766 = vmatpush2.bf16.msra.mxu0 0
  %767 = vmatprep.subr.bf16.mxu0 0
  %768 = vmatpush2.bf16.msra.mxu0 0
  %769 = vmatprep.subr.bf16.mxu0 0
  %770 = vmatpush2.bf16.msra.mxu0 0
  %771 = vmatprep.subr.bf16.mxu0 0
  %772 = vmatpush2.bf16.msra.mxu0 0
  %773 = vmatprep.subr.bf16.mxu0 0
  %774 = vmatpush2.bf16.msra.mxu0 0
  %775 = vmatprep.subr.bf16.mxu0 0
  %776 = vmatpush2.bf16.msra.mxu0 0
  %777 = vmatprep.mubr.bf16.mxu0 0
  %778 = vmatmul.mubr.bf16.gmra.mxu0 0
  %v779 = vpop.f32.mrf.mxu0
  %v780 = vadd.f32 0.0, %v779
  %v781 = vpop.f32.mrf.mxu0
  %v782 = vpop.f32.mrf.mxu0
  %v783 = vpop.f32.mrf.mxu0
  %784 = vdwg.mxu0
  %v785 = vadd.f32 %v696, %v780
  %v786 = vtanh.pop %v785
  %787 = vst [vmem:[%s8] sm:$0xff] %v786
  %v788 = vld [vmem:[#allocation2 + $0x8] sm:$0xff]
  %v789 = vadd.f32 %v788, %v497
  %v790 = vpack.c.bf16 %v786, %v786
  %791 = vmatprep.subr.bf16.mxu0 0
  %792 = vmatpush1.bf16.msra.mxu0 %v736
  %793 = vmatprep.subr.bf16.mxu0 0
  %794 = vmatpush1.bf16.msra.mxu0 %v735
  %795 = vmatprep.subr.bf16.mxu0 0
  %796 = vmatpush1.bf16.msra.mxu0 %v734
  %797 = vmatprep.subr.bf16.mxu0 0
  %798 = vmatpush1.bf16.msra.mxu0 %v733
  %799 = vmatprep.subr.bf16.mxu0 0
  %800 = vmatpush1.bf16.msra.mxu0 %v732
  %801 = vmatprep.subr.bf16.mxu0 0
  %802 = vmatpush1.bf16.msra.mxu0 %v731
  %803 = vmatprep.subr.bf16.mxu0 0
  %804 = vmatpush1.bf16.msra.mxu0 %v730
  %805 = vmatprep.subr.bf16.mxu0 0
  %806 = vmatpush1.bf16.msra.mxu0 %v729
  %807 = vmatprep.subr.bf16.mxu0 0
  %808 = vmatpush2.bf16.msra.mxu0 0
  %809 = vmatprep.subr.bf16.mxu0 0
  %810 = vmatpush2.bf16.msra.mxu0 0
  %811 = vmatprep.subr.bf16.mxu0 0
  %812 = vmatpush2.bf16.msra.mxu0 0
  %813 = vmatprep.subr.bf16.mxu0 0
  %814 = vmatpush2.bf16.msra.mxu0 0
  %815 = vmatprep.subr.bf16.mxu0 0
  %816 = vmatpush2.bf16.msra.mxu0 0
  %817 = vmatprep.subr.bf16.mxu0 0
  %818 = vmatpush2.bf16.msra.mxu0 0
  %819 = vmatprep.subr.bf16.mxu0 0
  %820 = vmatpush2.bf16.msra.mxu0 0
  %821 = vmatprep.subr.bf16.mxu0 0
  %822 = vmatpush2.bf16.msra.mxu0 0
  %823 = vmatprep.mubr.bf16.mxu0 0
  %824 = vmatmul.mubr.bf16.gmra.mxu0 %v790
  %v825 = vpop.f32.mrf.mxu0
  %v826 = vadd.f32 0.0, %v825
  %v827 = vpop.f32.mrf.mxu0
  %v828 = vpop.f32.mrf.mxu0
  %v829 = vpop.f32.mrf.mxu0
  %830 = vdwg.mxu0
  %v831 = vadd.f32 %v789, %v826
  %v832 = vtanh.pop %v831
  %833 = vst [vmem:[%s8 + $0x8] sm:$0xff] %v832
  %v834 = vld [vmem:[#allocation2 + $0x10] sm:$0xff]
  %v835 = vadd.f32 %v834, %v497
  %v836 = vpack.c.bf16 %v832, %v832
  %837 = vmatprep.subr.bf16.mxu0 0
  %838 = vmatpush1.bf16.msra.mxu0 %v736
  %839 = vmatprep.subr.bf16.mxu0 0
  %840 = vmatpush1.bf16.msra.mxu0 %v735
  %841 = vmatprep.subr.bf16.mxu0 0
  %842 = vmatpush1.bf16.msra.mxu0 %v734
  %843 = vmatprep.subr.bf16.mxu0 0
  %844 = vmatpush1.bf16.msra.mxu0 %v733
  %845 = vmatprep.subr.bf16.mxu0 0
  %846 = vmatpush1.bf16.msra.mxu0 %v732
  %847 = vmatprep.subr.bf16.mxu0 0
  %848 = vmatpush1.bf16.msra.mxu0 %v731
  %849 = vmatprep.subr.bf16.mxu0 0
  %850 = vmatpush1.bf16.msra.mxu0 %v730
  %851 = vmatprep.subr.bf16.mxu0 0
  %852 = vmatpush1.bf16.msra.mxu0 %v729
  %853 = vmatprep.subr.bf16.mxu0 0
  %854 = vmatpush2.bf16.msra.mxu0 0
  %855 = vmatprep.subr.bf16.mxu0 0
  %856 = vmatpush2.bf16.msra.mxu0 0
  %857 = vmatprep.subr.bf16.mxu0 0
  %858 = vmatpush2.bf16.msra.mxu0 0
  %859 = vmatprep.subr.bf16.mxu0 0
  %860 = vmatpush2.bf16.msra.mxu0 0
  %861 = vmatprep.subr.bf16.mxu0 0
  %862 = vmatpush2.bf16.msra.mxu0 0
  %863 = vmatprep.subr.bf16.mxu0 0
  %864 = vmatpush2.bf16.msra.mxu0 0
  %865 = vmatprep.subr.bf16.mxu0 0
  %866 = vmatpush2.bf16.msra.mxu0 0
  %867 = vmatprep.subr.bf16.mxu0 0
  %868 = vmatpush2.bf16.msra.mxu0 0
  %869 = vmatprep.mubr.bf16.mxu0 0
  %870 = vmatmul.mubr.bf16.gmra.mxu0 %v836
  %v871 = vpop.f32.mrf.mxu0
  %v872 = vadd.f32 0.0, %v871
  %v873 = vpop.f32.mrf.mxu0
  %v874 = vpop.f32.mrf.mxu0
  %v875 = vpop.f32.mrf.mxu0
  %876 = vdwg.mxu0
  %v877 = vadd.f32 %v835, %v872
  %v878 = vtanh.pop %v877
  %879 = vst [vmem:[%s8 + $0x10] sm:$0xff] %v878
  %v880 = vld [vmem:[#allocation2 + $0x18] sm:$0xff]
  %v881 = vadd.f32 %v880, %v497
  %v882 = vpack.c.bf16 %v878, %v878
  %883 = vmatprep.subr.bf16.mxu0 0
  %884 = vmatpush1.bf16.msra.mxu0 %v736
  %885 = vmatprep.subr.bf16.mxu0 0
  %886 = vmatpush1.bf16.msra.mxu0 %v735
  %887 = vmatprep.subr.bf16.mxu0 0
  %888 = vmatpush1.bf16.msra.mxu0 %v734
  %889 = vmatprep.subr.bf16.mxu0 0
  %890 = vmatpush1.bf16.msra.mxu0 %v733
  %891 = vmatprep.subr.bf16.mxu0 0
  %892 = vmatpush1.bf16.msra.mxu0 %v732
  %893 = vmatprep.subr.bf16.mxu0 0
  %894 = vmatpush1.bf16.msra.mxu0 %v731
  %895 = vmatprep.subr.bf16.mxu0 0
  %896 = vmatpush1.bf16.msra.mxu0 %v730
  %897 = vmatprep.subr.bf16.mxu0 0
  %898 = vmatpush1.bf16.msra.mxu0 %v729
  %899 = vmatprep.subr.bf16.mxu0 0
  %900 = vmatpush2.bf16.msra.mxu0 0
  %901 = vmatprep.subr.bf16.mxu0 0
  %902 = vmatpush2.bf16.msra.mxu0 0
  %903 = vmatprep.subr.bf16.mxu0 0
  %904 = vmatpush2.bf16.msra.mxu0 0
  %905 = vmatprep.subr.bf16.mxu0 0
  %906 = vmatpush2.bf16.msra.mxu0 0
  %907 = vmatprep.subr.bf16.mxu0 0
  %908 = vmatpush2.bf16.msra.mxu0 0
  %909 = vmatprep.subr.bf16.mxu0 0
  %910 = vmatpush2.bf16.msra.mxu0 0
  %911 = vmatprep.subr.bf16.mxu0 0
  %912 = vmatpush2.bf16.msra.mxu0 0
  %913 = vmatprep.subr.bf16.mxu0 0
  %914 = vmatpush2.bf16.msra.mxu0 0
  %915 = vmatprep.mubr.bf16.mxu0 0
  %916 = vmatmul.mubr.bf16.gmra.mxu0 %v882
  %v917 = vpop.f32.mrf.mxu0
  %v918 = vadd.f32 0.0, %v917
  %v919 = vpop.f32.mrf.mxu0
  %v920 = vpop.f32.mrf.mxu0
  %v921 = vpop.f32.mrf.mxu0
  %922 = vdwg.mxu0
  %v923 = vadd.f32 %v881, %v918
  %v924 = vtanh.pop %v923
  %925 = vst [vmem:[%s8 + $0x18] sm:$0xff] %v924
  %v926 = vld [vmem:[#allocation2 + $0x20] sm:$0xff]
  %v927 = vadd.f32 %v926, %v497
  %v928 = vpack.c.bf16 %v924, %v924
  %929 = vmatprep.subr.bf16.mxu0 0
  %930 = vmatpush1.bf16.msra.mxu0 %v736
  %931 = vmatprep.subr.bf16.mxu0 0
  %932 = vmatpush1.bf16.msra.mxu0 %v735
  %933 = vmatprep.subr.bf16.mxu0 0
  %934 = vmatpush1.bf16.msra.mxu0 %v734
  %935 = vmatprep.subr.bf16.mxu0 0
  %936 = vmatpush1.bf16.msra.mxu0 %v733
  %937 = vmatprep.subr.bf16.mxu0 0
  %938 = vmatpush1.bf16.msra.mxu0 %v732
  %939 = vmatprep.subr.bf16.mxu0 0
  %940 = vmatpush1.bf16.msra.mxu0 %v731
  %941 = vmatprep.subr.bf16.mxu0 0
  %942 = vmatpush1.bf16.msra.mxu0 %v730
  %943 = vmatprep.subr.bf16.mxu0 0
  %944 = vmatpush1.bf16.msra.mxu0 %v729
  %945 = vmatprep.subr.bf16.mxu0 0
  %946 = vmatpush2.bf16.msra.mxu0 0
  %947 = vmatprep.subr.bf16.mxu0 0
  %948 = vmatpush2.bf16.msra.mxu0 0
  %949 = vmatprep.subr.bf16.mxu0 0
  %950 = vmatpush2.bf16.msra.mxu0 0
  %951 = vmatprep.subr.bf16.mxu0 0
  %952 = vmatpush2.bf16.msra.mxu0 0
  %953 = vmatprep.subr.bf16.mxu0 0
  %954 = vmatpush2.bf16.msra.mxu0 0
  %955 = vmatprep.subr.bf16.mxu0 0
  %956 = vmatpush2.bf16.msra.mxu0 0
  %957 = vmatprep.subr.bf16.mxu0 0
  %958 = vmatpush2.bf16.msra.mxu0 0
  %959 = vmatprep.subr.bf16.mxu0 0
  %960 = vmatpush2.bf16.msra.mxu0 0
  %961 = vmatprep.mubr.bf16.mxu0 0
  %962 = vmatmul.mubr.bf16.gmra.mxu0 %v928
  %v963 = vpop.f32.mrf.mxu0
  %v964 = vadd.f32 0.0, %v963
  %v965 = vpop.f32.mrf.mxu0
  %v966 = vpop.f32.mrf.mxu0
  %v967 = vpop.f32.mrf.mxu0
  %968 = vdwg.mxu0
  %v969 = vadd.f32 %v927, %v964
  %v970 = vtanh.pop %v969
  %971 = vst [vmem:[%s8 + $0x20] sm:$0xff] %v970
  %v972 = vld [vmem:[#allocation2 + $0x28] sm:$0xff]
  %v973 = vadd.f32 %v972, %v497
  %v974 = vpack.c.bf16 %v970, %v970
  %975 = vmatprep.subr.bf16.mxu0 0
  %976 = vmatpush1.bf16.msra.mxu0 %v736
  %977 = vmatprep.subr.bf16.mxu0 0
  %978 = vmatpush1.bf16.msra.mxu0 %v735
  %979 = vmatprep.subr.bf16.mxu0 0
  %980 = vmatpush1.bf16.msra.mxu0 %v734
  %981 = vmatprep.subr.bf16.mxu0 0
  %982 = vmatpush1.bf16.msra.mxu0 %v733
  %983 = vmatprep.subr.bf16.mxu0 0
  %984 = vmatpush1.bf16.msra.mxu0 %v732
  %985 = vmatprep.subr.bf16.mxu0 0
  %986 = vmatpush1.bf16.msra.mxu0 %v731
  %987 = vmatprep.subr.bf16.mxu0 0
  %988 = vmatpush1.bf16.msra.mxu0 %v730
  %989 = vmatprep.subr.bf16.mxu0 0
  %990 = vmatpush1.bf16.msra.mxu0 %v729
  %991 = vmatprep.subr.bf16.mxu0 0
  %992 = vmatpush2.bf16.msra.mxu0 0
  %993 = vmatprep.subr.bf16.mxu0 0
  %994 = vmatpush2.bf16.msra.mxu0 0
  %995 = vmatprep.subr.bf16.mxu0 0
  %996 = vmatpush2.bf16.msra.mxu0 0
  %997 = vmatprep.subr.bf16.mxu0 0
  %998 = vmatpush2.bf16.msra.mxu0 0
  %999 = vmatprep.subr.bf16.mxu0 0
  %1000 = vmatpush2.bf16.msra.mxu0 0
  %1001 = vmatprep.subr.bf16.mxu0 0
  %1002 = vmatpush2.bf16.msra.mxu0 0
  %1003 = vmatprep.subr.bf16.mxu0 0
  %1004 = vmatpush2.bf16.msra.mxu0 0
  %1005 = vmatprep.subr.bf16.mxu0 0
  %1006 = vmatpush2.bf16.msra.mxu0 0
  %1007 = vmatprep.mubr.bf16.mxu0 0
  %1008 = vmatmul.mubr.bf16.gmra.mxu0 %v974
  %v1009 = vpop.f32.mrf.mxu0
  %v1010 = vadd.f32 0.0, %v1009
  %v1011 = vpop.f32.mrf.mxu0
  %v1012 = vpop.f32.mrf.mxu0
  %v1013 = vpop.f32.mrf.mxu0
  %1014 = vdwg.mxu0
  %v1015 = vadd.f32 %v973, %v1010
  %v1016 = vtanh.pop %v1015
  %1017 = vst [vmem:[%s8 + $0x28] sm:$0xff] %v1016
  %v1018 = vld [vmem:[#allocation2 + $0x30] sm:$0xff]
  %v1019 = vadd.f32 %v1018, %v497
  %v1020 = vpack.c.bf16 %v1016, %v1016
  %1021 = vmatprep.subr.bf16.mxu0 0
  %1022 = vmatpush1.bf16.msra.mxu0 %v736
  %1023 = vmatprep.subr.bf16.mxu0 0
  %1024 = vmatpush1.bf16.msra.mxu0 %v735
  %1025 = vmatprep.subr.bf16.mxu0 0
  %1026 = vmatpush1.bf16.msra.mxu0 %v734
  %1027 = vmatprep.subr.bf16.mxu0 0
  %1028 = vmatpush1.bf16.msra.mxu0 %v733
  %1029 = vmatprep.subr.bf16.mxu0 0
  %1030 = vmatpush1.bf16.msra.mxu0 %v732
  %1031 = vmatprep.subr.bf16.mxu0 0
  %1032 = vmatpush1.bf16.msra.mxu0 %v731
  %1033 = vmatprep.subr.bf16.mxu0 0
  %1034 = vmatpush1.bf16.msra.mxu0 %v730
  %1035 = vmatprep.subr.bf16.mxu0 0
  %1036 = vmatpush1.bf16.msra.mxu0 %v729
  %1037 = vmatprep.subr.bf16.mxu0 0
  %1038 = vmatpush2.bf16.msra.mxu0 0
  %1039 = vmatprep.subr.bf16.mxu0 0
  %1040 = vmatpush2.bf16.msra.mxu0 0
  %1041 = vmatprep.subr.bf16.mxu0 0
  %1042 = vmatpush2.bf16.msra.mxu0 0
  %1043 = vmatprep.subr.bf16.mxu0 0
  %1044 = vmatpush2.bf16.msra.mxu0 0
  %1045 = vmatprep.subr.bf16.mxu0 0
  %1046 = vmatpush2.bf16.msra.mxu0 0
  %1047 = vmatprep.subr.bf16.mxu0 0
  %1048 = vmatpush2.bf16.msra.mxu0 0
  %1049 = vmatprep.subr.bf16.mxu0 0
  %1050 = vmatpush2.bf16.msra.mxu0 0
  %1051 = vmatprep.subr.bf16.mxu0 0
  %1052 = vmatpush2.bf16.msra.mxu0 0
  %1053 = vmatprep.mubr.bf16.mxu0 0
  %1054 = vmatmul.mubr.bf16.gmra.mxu0 %v1020
  %v1055 = vpop.f32.mrf.mxu0
  %v1056 = vadd.f32 0.0, %v1055
  %v1057 = vpop.f32.mrf.mxu0
  %v1058 = vpop.f32.mrf.mxu0
  %v1059 = vpop.f32.mrf.mxu0
  %1060 = vdwg.mxu0
  %v1061 = vadd.f32 %v1019, %v1056
  %v1062 = vtanh.pop %v1061
  %1063 = vst [vmem:[%s8 + $0x30] sm:$0xff] %v1062
  %v1064 = vld [vmem:[#allocation2 + $0x38] sm:$0xff]
  %v1065 = vadd.f32 %v1064, %v497
  %v1066 = vpack.c.bf16 %v1062, %v1062
  %1067 = vmatprep.subr.bf16.mxu0 0
  %1068 = vmatpush1.bf16.msra.mxu0 %v736
  %1069 = vmatprep.subr.bf16.mxu0 0
  %1070 = vmatpush1.bf16.msra.mxu0 %v735
  %1071 = vmatprep.subr.bf16.mxu0 0
  %1072 = vmatpush1.bf16.msra.mxu0 %v734
  %1073 = vmatprep.subr.bf16.mxu0 0
  %1074 = vmatpush1.bf16.msra.mxu0 %v733
  %1075 = vmatprep.subr.bf16.mxu0 0
  %1076 = vmatpush1.bf16.msra.mxu0 %v732
  %1077 = vmatprep.subr.bf16.mxu0 0
  %1078 = vmatpush1.bf16.msra.mxu0 %v731
  %1079 = vmatprep.subr.bf16.mxu0 0
  %1080 = vmatpush1.bf16.msra.mxu0 %v730
  %1081 = vmatprep.subr.bf16.mxu0 0
  %1082 = vmatpush1.bf16.msra.mxu0 %v729
  %1083 = vmatprep.subr.bf16.mxu0 0
  %1084 = vmatpush2.bf16.msra.mxu0 0
  %1085 = vmatprep.subr.bf16.mxu0 0
  %1086 = vmatpush2.bf16.msra.mxu0 0
  %1087 = vmatprep.subr.bf16.mxu0 0
  %1088 = vmatpush2.bf16.msra.mxu0 0
  %1089 = vmatprep.subr.bf16.mxu0 0
  %1090 = vmatpush2.bf16.msra.mxu0 0
  %1091 = vmatprep.subr.bf16.mxu0 0
  %1092 = vmatpush2.bf16.msra.mxu0 0
  %1093 = vmatprep.subr.bf16.mxu0 0
  %1094 = vmatpush2.bf16.msra.mxu0 0
  %1095 = vmatprep.subr.bf16.mxu0 0
  %1096 = vmatpush2.bf16.msra.mxu0 0
  %1097 = vmatprep.subr.bf16.mxu0 0
  %1098 = vmatpush2.bf16.msra.mxu0 0
  %1099 = vmatprep.mubr.bf16.mxu0 0
  %1100 = vmatmul.mubr.bf16.gmra.mxu0 %v1066
  %v1101 = vpop.f32.mrf.mxu0
  %v1102 = vadd.f32 0.0, %v1101
  %v1103 = vpop.f32.mrf.mxu0
  %v1104 = vpop.f32.mrf.mxu0
  %v1105 = vpop.f32.mrf.mxu0
  %1106 = vdwg.mxu0
  %v1107 = vadd.f32 %v1065, %v1102
  %v1108 = vtanh.pop %v1107
  %1109 = vst [vmem:[%s8 + $0x38] sm:$0xff] %v1108
  // Predicated region
  $region34: #{captioning_forward.2} parent=0 // pred_check
    _
  $region35: #{captioning_forward.2} parent=0 // pred_check_branch
    %1111 = sbr.rel (0) target = $region37
  $region36: #{captioning_forward.2} parent=0 // pred_region
    _
  $region37: #{captioning_forward.2} parent=0 // pred_fallthru
    _
  // Predicated region
  $region38: #{captioning_forward.2} parent=0 // pred_check
    _
  $region39: #{captioning_forward.2} parent=0 // pred_check_branch
    %1113 = sbr.rel (0) target = $region41
  $region40: #{captioning_forward.2} parent=0 // pred_region
    _
  $region41: #{captioning_forward.2} parent=0 // pred_fallthru
    _

</llo_original>
